<compile_context>
chip_gen: v7x
topology: tpu7x:2x2x1
jax: 0.10.0
libtpu: 0.0.40
codegen_flags: <defaults>
</compile_context>

<pallas_src>
import jax
import jax.numpy as jnp
from jax.experimental import pallas as pl
from jax.experimental.pallas import tpu as pltpu

BN_EPS = 1e-5


def _round_up(a, b):
    return (a + b - 1) // b * b


def aspp_forward(x, weight, gamma, beta, *, padding, dilation):
    """x: [N, Cin, D, H, W]; weight: [Cout, Cin, k, k, k]; gamma/beta: [Cout]."""
    N, Cin, D, H, W = x.shape
    Cout, Cin_w, k, k_h, k_w = weight.shape
    assert Cin_w == Cin and k == k_h == k_w
    p, dil = padding, dilation
    # ASPP always uses "same"-size atrous convs (k=1,p=0,dil=1  or  k=3,p=dil).
    assert 2 * p == dil * (k - 1), "only same-size atrous convs are supported"
    # TODO(synk): general (non-"same") padding/dilation needs output-size-aware offsets.

    HW = H * W
    HWp = _round_up(max(HW, 128), 128)            # lane-dense tile width (multiple of 128)
    Hp = H + 2 * p
    Dp = D + 2 * p
    # flat plane length: p leading zeros + Hp*W data + tail so every tap window of HWp fits
    L = _round_up(2 * p * W + 2 * p + HWp, 128)
    KKK = k * k * k
    M = N * D * HW

    # ---- glue: ~1x pad/transpose/cast copies only (the 27x im2col is gone) ----
    xb = x.astype(jnp.bfloat16)
    xp = jnp.pad(xb, ((0, 0), (0, 0), (p, p), (p, p), (0, 0)))      # pad D and H, not W
    xp = jnp.transpose(xp, (0, 2, 1, 3, 4))                         # (N, Dp, Cin, Hp, W)
    xp = xp.reshape(N, Dp, Cin, Hp * W)
    x_planes = jnp.pad(xp, ((0, 0), (0, 0), (0, 0), (p, L - p - Hp * W)))

    # weights (Cout, Cin, kd, kh, kw) -> (kd*kh*kw, Cout, Cin), VMEM-resident, fetched once
    w_flat = jnp.transpose(weight, (2, 3, 4, 0, 1)).reshape(KKK, Cout, Cin).astype(jnp.bfloat16)

    # per-kw lane masks: output column w is valid for tap kw iff 0 <= w + kw*dil - p < W
    w_idx = jnp.arange(HWp, dtype=jnp.int32) % W
    wmask = jnp.stack(
        [((w_idx + (kw * dil - p)) >= 0) & ((w_idx + (kw * dil - p)) < W) for kw in range(k)],
        axis=0,
    ).astype(jnp.float32)                                           # (k, HWp)

    # ---- pass 1: dilated conv + per-(n, d) BN partial statistics ----
    def conv_stats_kernel(x_ref, w_ref, m_ref, conv_ref, sum_ref, m2_ref, acc_ref):
        kd = pl.program_id(2)

        @pl.when(kd == 0)
        def _():
            acc_ref[...] = jnp.zeros_like(acc_ref)

        acc = acc_ref[...]
        for kw in range(k):
            delta = kw * dil - p
            if delta <= -W or delta >= W:          # tap never overlaps a valid column
                continue
            part = None
            for kh in range(k):
                st = kh * dil * W + kw * dil       # static lane offset of this tap's window
                x_t = x_ref[:, st:st + HWp]                              # (Cin, HWp) bf16
                w_t = w_ref[kd * (k * k) + kh * k + kw]                  # (Cout, Cin) bf16
                d_t = jnp.dot(w_t, x_t, preferred_element_type=jnp.float32)
                part = d_t if part is None else part + d_t
            if delta != 0:                         # zero out-of-image W columns for border taps
                part = part * m_ref[kw:kw + 1, :]
            acc = acc + part
        acc_ref[...] = acc

        @pl.when(kd == k - 1)
        def _():
            conv_ref[...] = acc.astype(conv_ref.dtype)     # bf16 intermediate writeback
            valid = acc[:, :HW]                            # BN stats over real pixels only
            tsum = jnp.sum(valid, axis=1, keepdims=True)   # (Cout, 1)
            cent = valid - tsum * (1.0 / HW)
            sum_ref[...] = tsum
            m2_ref[...] = jnp.sum(cent * cent, axis=1, keepdims=True)

    cparams1 = pltpu.CompilerParams(
        dimension_semantics=("parallel", "parallel", "arbitrary"),   # (N, D) shard across TCs
        vmem_limit_bytes=48 * 1024 * 1024,       # headroom below v7x's 64 MiB; roomy on v5e/v6e
    )

    conv_t, psum, pm2 = pl.pallas_call(
        conv_stats_kernel,
        out_shape=(
            jax.ShapeDtypeStruct((N, D, Cout, HWp), jnp.bfloat16),
            jax.ShapeDtypeStruct((N, D, Cout, 1), jnp.float32),
            jax.ShapeDtypeStruct((N, D, Cout, 1), jnp.float32),
        ),
        grid_spec=pltpu.PrefetchScalarGridSpec(
            num_scalar_prefetch=0,
            grid=(N, D, k),
            in_specs=[
                pl.BlockSpec((None, None, Cin, L), lambda n, d, kd: (n, d + kd * dil, 0, 0)),
                pl.BlockSpec((KKK, Cout, Cin), lambda n, d, kd: (0, 0, 0)),
                pl.BlockSpec((k, HWp), lambda n, d, kd: (0, 0)),
            ],
            out_specs=[
                pl.BlockSpec((None, None, Cout, HWp), lambda n, d, kd: (n, d, 0, 0)),
                pl.BlockSpec((None, None, Cout, 1), lambda n, d, kd: (n, d, 0, 0)),
                pl.BlockSpec((None, None, Cout, 1), lambda n, d, kd: (n, d, 0, 0)),
            ],
            scratch_shapes=[pltpu.VMEM((Cout, HWp), jnp.float32)],
        ),
        compiler_params=cparams1,
    )(x_planes, w_flat, wmask)
    # TODO(synk): for very large Cin (>~1024) add a Cin-reduction grid axis so the resident
    # (k^3, Cout, Cin) weight block and the (Cin, L) plane stay within v7x's 64 MiB VMEM.

    # ---- fold batch statistics (Chan combine of per-tile mean/M2; tiny f32 work) ----
    tile_sum = psum[..., 0]                       # (N, D, Cout)
    tile_m2 = pm2[..., 0]
    mean = jnp.sum(tile_sum, axis=(0, 1)) / M
    tile_mean = tile_sum / HW
    m2 = jnp.sum(tile_m2, axis=(0, 1)) + HW * jnp.sum((tile_mean - mean) ** 2, axis=(0, 1))
    var = m2 / M                                  # biased variance (BatchNorm training mode)
    scale = gamma.astype(jnp.float32) * jax.lax.rsqrt(var + BN_EPS)
    bias = beta.astype(jnp.float32) - mean * scale

    # ---- pass 2: per-channel affine + ReLU, written directly in (N, Cout, D*HWp) layout ----
    def bn_relu_kernel(conv_ref, scale_ref, bias_ref, out_ref):
        y = conv_ref[...].astype(jnp.float32) * scale_ref[...] + bias_ref[...]
        out_ref[...] = jnp.maximum(y, 0.0)

    cparams2 = pltpu.CompilerParams(
        dimension_semantics=("parallel", "parallel"),
        vmem_limit_bytes=48 * 1024 * 1024,
    )

    out_flat = pl.pallas_call(
        bn_relu_kernel,
        out_shape=jax.ShapeDtypeStruct((N, Cout, D * HWp), jnp.float32),
        grid_spec=pltpu.PrefetchScalarGridSpec(
            num_scalar_prefetch=0,
            grid=(N, D),
            in_specs=[
                pl.BlockSpec((None, None, Cout, HWp), lambda n, d: (n, d, 0, 0)),
                pl.BlockSpec((Cout, 1), lambda n, d: (0, 0)),
                pl.BlockSpec((Cout, 1), lambda n, d: (0, 0)),
            ],
            out_specs=pl.BlockSpec((None, Cout, HWp), lambda n, d: (n, 0, d)),
        ),
        compiler_params=cparams2,
    )(conv_t, scale.reshape(Cout, 1), bias.reshape(Cout, 1))

    out = out_flat.reshape(N, Cout, D, HWp)       # free reshape (contiguous), no transpose
    if HWp != HW:
        out = out[..., :HW]
    return out.reshape(N, Cout, D, H, W)


def reference_forward(x, weight, gamma, beta, *, padding, dilation):
    """Pure-JAX reference of Conv3d -> BatchNorm3d (train-mode stats) -> ReLU."""
    y = jax.lax.conv_general_dilated(
        x,
        weight,
        window_strides=(1, 1, 1),
        padding=[(padding, padding)] * 3,
        rhs_dilation=(dilation, dilation, dilation),
        dimension_numbers=("NCDHW", "OIDHW", "NCDHW"),
    )
    mean = y.mean(axis=(0, 2, 3, 4), keepdims=True)
    var = ((y - mean) ** 2).mean(axis=(0, 2, 3, 4), keepdims=True)
    yn = (y - mean) * jax.lax.rsqrt(var + BN_EPS)
    yn = yn * gamma.reshape(1, -1, 1, 1, 1) + beta.reshape(1, -1, 1, 1, 1)
    return jnp.maximum(yn, 0.0)


if __name__ == "__main__":
    # small but representative shapes for the ASPP branch
    N, Cin, Cout = 2, 4, 8
    D, H, W = 8, 16, 16
    k, padding, dilation = 3, 2, 2        # padding == dilation -> "same" spatial size

    key = jax.random.PRNGKey(0)
    kx, kw_key, kg = jax.random.split(key, 3)

    x = jax.random.normal(kx, (N, Cin, D, H, W), dtype=jnp.float32)

    # Conv3d weight: kaiming_normal_ (fan_in, gain=sqrt(2)), no bias
    fan_in = Cin * k * k * k
    w_std = (2.0 / fan_in) ** 0.5
    weight = w_std * jax.random.normal(kw_key, (Cout, Cin, k, k, k), dtype=jnp.float32)

    # BatchNorm3d: weight ~ N(0, 1) (per _init_weight), bias default zeros
    gamma = jax.random.normal(kg, (Cout,), dtype=jnp.float32)
    beta = jnp.zeros((Cout,), dtype=jnp.float32)

    out = aspp_forward(x, weight, gamma, beta, padding=padding, dilation=dilation)
    out = jax.block_until_ready(out)

    ref = reference_forward(x, weight, gamma, beta, padding=padding, dilation=dilation)
    ref = jax.block_until_ready(ref)

    assert out.shape == (N, Cout, D, H, W), out.shape
    # bf16 conv inputs + bf16 inter-pass intermediate (f32 accumulation / f32 statistics)
    # -> mixed-precision tolerance vs the pure-f32 reference
    max_err = float(jnp.max(jnp.abs(out - ref)))
    assert max_err < 6e-2, max_err

    print("KERNEL_OK")
</pallas_src>

<mosaic_0001>
module attributes {stable_mosaic.version = 11 : i64} {
  func.func @conv_stats_kernel(%arg0: i32, %arg1: i32, %arg2: i32, %arg3: memref<1x1x4x384xbf16, #tpu.memory_space<vmem>>, %arg4: memref<27x8x4xbf16, #tpu.memory_space<vmem>>, %arg5: memref<3x256xf32, #tpu.memory_space<vmem>>, %arg6: memref<1x1x8x256xbf16, #tpu.memory_space<vmem>>, %arg7: memref<1x1x8x1xf32, #tpu.memory_space<vmem>>, %arg8: memref<1x1x8x1xf32, #tpu.memory_space<vmem>>, %arg9: memref<8x256xf32, #tpu.memory_space<vmem>>) attributes {dimension_semantics = [#tpu.dimension_semantics<parallel>, #tpu.dimension_semantics<parallel>, #tpu.dimension_semantics<arbitrary>], iteration_bounds = array<i64: 2, 8, 3>, scalar_prefetch = 0 : i64, scratch_operands = 1 : i64, tpu.core_type = #tpu.core_type<tc>, window_params = [{transform_indices = @transform_0, window_bounds = array<i64: 1, 1, 4, 384>}, {pipeline_mode = #tpu.pipeline_mode<synchronous>, transform_indices = @transform_1, window_bounds = array<i64: 27, 8, 4>}, {pipeline_mode = #tpu.pipeline_mode<synchronous>, transform_indices = @transform_2, window_bounds = array<i64: 3, 256>}, {transform_indices = @transform_3, window_bounds = array<i64: 1, 1, 8, 256>}, {transform_indices = @transform_4, window_bounds = array<i64: 1, 1, 8, 1>}, {transform_indices = @transform_5, window_bounds = array<i64: 1, 1, 8, 1>}]} {
    %c0_i32 = arith.constant 0 : i32
    %0 = arith.cmpi eq, %arg2, %c0_i32 : i32
    %1 = arith.extui %0 : i1 to i32
    %c0_i32_0 = arith.constant 0 : i32
    %2 = arith.cmpi ne, %1, %c0_i32_0 : i32
    scf.if %2 {
      %cst_86 = arith.constant 0.000000e+00 : f32
      %104 = vector.broadcast %cst_86 : f32 to vector<8x256xf32>
      %c0_87 = arith.constant 0 : index
      %c0_88 = arith.constant 0 : index
      %105 = vector.load %arg9[%c0_87, %c0_88] : memref<8x256xf32, #tpu.memory_space<vmem>>, vector<8x256xf32>
      tpu.vector_store %arg9[%c0_87, %c0_88], %104 {strides = array<i32>} : memref<8x256xf32, #tpu.memory_space<vmem>>, vector<8x256xf32>,
    } else {
    }
    %c0 = arith.constant 0 : index
    %c0_1 = arith.constant 0 : index
    %3 = vector.load %arg9[%c0, %c0_1] : memref<8x256xf32, #tpu.memory_space<vmem>>, vector<8x256xf32>
    %c0_2 = arith.constant 0 : index
    %c0_3 = arith.constant 0 : index
    %c0_4 = arith.constant 0 : index
    %c0_5 = arith.constant 0 : index
    %4 = vector.load %arg3[%c0_2, %c0_3, %c0_4, %c0_5] : memref<1x1x4x384xbf16, #tpu.memory_space<vmem>>, vector<1x1x4x256xbf16>
    %5 = vector.shape_cast %4 : vector<1x1x4x256xbf16> to vector<4x256xbf16>
    %c9_i32 = arith.constant 9 : i32
    %6 = arith.muli %arg2, %c9_i32 : i32
    %c0_i32_6 = arith.constant 0 : i32
    %7 = arith.addi %6, %c0_i32_6 : i32
    %c0_i32_7 = arith.constant 0 : i32
    %8 = arith.addi %7, %c0_i32_7 : i32
    %9 = arith.index_cast %8 : i32 to index
    %c0_8 = arith.constant 0 : index
    %c0_9 = arith.constant 0 : index
    %10 = vector.load %arg4[%9, %c0_8, %c0_9] : memref<27x8x4xbf16, #tpu.memory_space<vmem>>, vector<1x8x4xbf16>
    %11 = vector.shape_cast %10 : vector<1x8x4xbf16> to vector<8x4xbf16>
    %cst = arith.constant dense<0.000000e+00> : vector<8x256xf32>
    %12 = tpu.matmul %11, %5, %cst {dimension_numbers = #tpu.dot_dimension_numbers<[1], [0], [0], [1], [0, 0, 1, 1], [], []>} : vector<8x4xbf16>, vector<4x256xbf16>, vector<8x256xf32> -> vector<8x256xf32>
    %c0_10 = arith.constant 0 : index
    %c0_11 = arith.constant 0 : index
    %c0_12 = arith.constant 0 : index
    %c32 = arith.constant 32 : index
    %13 = vector.load %arg3[%c0_10, %c0_11, %c0_12, %c32] : memref<1x1x4x384xbf16, #tpu.memory_space<vmem>>, vector<1x1x4x256xbf16>
    %14 = vector.shape_cast %13 : vector<1x1x4x256xbf16> to vector<4x256xbf16>
    %c9_i32_13 = arith.constant 9 : i32
    %15 = arith.muli %arg2, %c9_i32_13 : i32
    %c3_i32 = arith.constant 3 : i32
    %16 = arith.addi %15, %c3_i32 : i32
    %c0_i32_14 = arith.constant 0 : i32
    %17 = arith.addi %16, %c0_i32_14 : i32
    %18 = arith.index_cast %17 : i32 to index
    %c0_15 = arith.constant 0 : index
    %c0_16 = arith.constant 0 : index
    %19 = vector.load %arg4[%18, %c0_15, %c0_16] : memref<27x8x4xbf16, #tpu.memory_space<vmem>>, vector<1x8x4xbf16>
    %20 = vector.shape_cast %19 : vector<1x8x4xbf16> to vector<8x4xbf16>
    %cst_17 = arith.constant dense<0.000000e+00> : vector<8x256xf32>
    %21 = tpu.matmul %20, %14, %cst_17 {dimension_numbers = #tpu.dot_dimension_numbers<[1], [0], [0], [1], [0, 0, 1, 1], [], []>} : vector<8x4xbf16>, vector<4x256xbf16>, vector<8x256xf32> -> vector<8x256xf32>
    %22 = arith.addf %12, %21 : vector<8x256xf32>
    %c0_18 = arith.constant 0 : index
    %c0_19 = arith.constant 0 : index
    %c0_20 = arith.constant 0 : index
    %c64 = arith.constant 64 : index
    %23 = vector.load %arg3[%c0_18, %c0_19, %c0_20, %c64] : memref<1x1x4x384xbf16, #tpu.memory_space<vmem>>, vector<1x1x4x256xbf16>
    %24 = vector.shape_cast %23 : vector<1x1x4x256xbf16> to vector<4x256xbf16>
    %c9_i32_21 = arith.constant 9 : i32
    %25 = arith.muli %arg2, %c9_i32_21 : i32
    %c6_i32 = arith.constant 6 : i32
    %26 = arith.addi %25, %c6_i32 : i32
    %c0_i32_22 = arith.constant 0 : i32
    %27 = arith.addi %26, %c0_i32_22 : i32
    %28 = arith.index_cast %27 : i32 to index
    %c0_23 = arith.constant 0 : index
    %c0_24 = arith.constant 0 : index
    %29 = vector.load %arg4[%28, %c0_23, %c0_24] : memref<27x8x4xbf16, #tpu.memory_space<vmem>>, vector<1x8x4xbf16>
    %30 = vector.shape_cast %29 : vector<1x8x4xbf16> to vector<8x4xbf16>
    %cst_25 = arith.constant dense<0.000000e+00> : vector<8x256xf32>
    %31 = tpu.matmul %30, %24, %cst_25 {dimension_numbers = #tpu.dot_dimension_numbers<[1], [0], [0], [1], [0, 0, 1, 1], [], []>} : vector<8x4xbf16>, vector<4x256xbf16>, vector<8x256xf32> -> vector<8x256xf32>
    %32 = arith.addf %22, %31 : vector<8x256xf32>
    %c0_26 = arith.constant 0 : index
    %c0_27 = arith.constant 0 : index
    %33 = vector.load %arg5[%c0_26, %c0_27] : memref<3x256xf32, #tpu.memory_space<vmem>>, vector<1x256xf32>
    %34 = vector.broadcast %33 : vector<1x256xf32> to vector<8x256xf32>
    %35 = arith.mulf %32, %34 : vector<8x256xf32>
    %36 = arith.addf %3, %35 : vector<8x256xf32>
    %c0_28 = arith.constant 0 : index
    %c0_29 = arith.constant 0 : index
    %c0_30 = arith.constant 0 : index
    %c2 = arith.constant 2 : index
    %37 = vector.load %arg3[%c0_28, %c0_29, %c0_30, %c2] : memref<1x1x4x384xbf16, #tpu.memory_space<vmem>>, vector<1x1x4x256xbf16>
    %38 = vector.shape_cast %37 : vector<1x1x4x256xbf16> to vector<4x256xbf16>
    %c9_i32_31 = arith.constant 9 : i32
    %39 = arith.muli %arg2, %c9_i32_31 : i32
    %c0_i32_32 = arith.constant 0 : i32
    %40 = arith.addi %39, %c0_i32_32 : i32
    %c1_i32 = arith.constant 1 : i32
    %41 = arith.addi %40, %c1_i32 : i32
    %42 = arith.index_cast %41 : i32 to index
    %c0_33 = arith.constant 0 : index
    %c0_34 = arith.constant 0 : index
    %43 = vector.load %arg4[%42, %c0_33, %c0_34] : memref<27x8x4xbf16, #tpu.memory_space<vmem>>, vector<1x8x4xbf16>
    %44 = vector.shape_cast %43 : vector<1x8x4xbf16> to vector<8x4xbf16>
    %cst_35 = arith.constant dense<0.000000e+00> : vector<8x256xf32>
    %45 = tpu.matmul %44, %38, %cst_35 {dimension_numbers = #tpu.dot_dimension_numbers<[1], [0], [0], [1], [0, 0, 1, 1], [], []>} : vector<8x4xbf16>, vector<4x256xbf16>, vector<8x256xf32> -> vector<8x256xf32>
    %c0_36 = arith.constant 0 : index
    %c0_37 = arith.constant 0 : index
    %c0_38 = arith.constant 0 : index
    %c34 = arith.constant 34 : index
    %46 = vector.load %arg3[%c0_36, %c0_37, %c0_38, %c34] : memref<1x1x4x384xbf16, #tpu.memory_space<vmem>>, vector<1x1x4x256xbf16>
    %47 = vector.shape_cast %46 : vector<1x1x4x256xbf16> to vector<4x256xbf16>
    %c9_i32_39 = arith.constant 9 : i32
    %48 = arith.muli %arg2, %c9_i32_39 : i32
    %c3_i32_40 = arith.constant 3 : i32
    %49 = arith.addi %48, %c3_i32_40 : i32
    %c1_i32_41 = arith.constant 1 : i32
    %50 = arith.addi %49, %c1_i32_41 : i32
    %51 = arith.index_cast %50 : i32 to index
    %c0_42 = arith.constant 0 : index
    %c0_43 = arith.constant 0 : index
    %52 = vector.load %arg4[%51, %c0_42, %c0_43] : memref<27x8x4xbf16, #tpu.memory_space<vmem>>, vector<1x8x4xbf16>
    %53 = vector.shape_cast %52 : vector<1x8x4xbf16> to vector<8x4xbf16>
    %cst_44 = arith.constant dense<0.000000e+00> : vector<8x256xf32>
    %54 = tpu.matmul %53, %47, %cst_44 {dimension_numbers = #tpu.dot_dimension_numbers<[1], [0], [0], [1], [0, 0, 1, 1], [], []>} : vector<8x4xbf16>, vector<4x256xbf16>, vector<8x256xf32> -> vector<8x256xf32>
    %55 = arith.addf %45, %54 : vector<8x256xf32>
    %c0_45 = arith.constant 0 : index
    %c0_46 = arith.constant 0 : index
    %c0_47 = arith.constant 0 : index
    %c66 = arith.constant 66 : index
    %56 = vector.load %arg3[%c0_45, %c0_46, %c0_47, %c66] : memref<1x1x4x384xbf16, #tpu.memory_space<vmem>>, vector<1x1x4x256xbf16>
    %57 = vector.shape_cast %56 : vector<1x1x4x256xbf16> to vector<4x256xbf16>
    %c9_i32_48 = arith.constant 9 : i32
    %58 = arith.muli %arg2, %c9_i32_48 : i32
    %c6_i32_49 = arith.constant 6 : i32
    %59 = arith.addi %58, %c6_i32_49 : i32
    %c1_i32_50 = arith.constant 1 : i32
    %60 = arith.addi %59, %c1_i32_50 : i32
    %61 = arith.index_cast %60 : i32 to index
    %c0_51 = arith.constant 0 : index
    %c0_52 = arith.constant 0 : index
    %62 = vector.load %arg4[%61, %c0_51, %c0_52] : memref<27x8x4xbf16, #tpu.memory_space<vmem>>, vector<1x8x4xbf16>
    %63 = vector.shape_cast %62 : vector<1x8x4xbf16> to vector<8x4xbf16>
    %cst_53 = arith.constant dense<0.000000e+00> : vector<8x256xf32>
    %64 = tpu.matmul %63, %57, %cst_53 {dimension_numbers = #tpu.dot_dimension_numbers<[1], [0], [0], [1], [0, 0, 1, 1], [], []>} : vector<8x4xbf16>, vector<4x256xbf16>, vector<8x256xf32> -> vector<8x256xf32>
    %65 = arith.addf %55, %64 : vector<8x256xf32>
    %66 = arith.addf %36, %65 : vector<8x256xf32>
    %c0_54 = arith.constant 0 : index
    %c0_55 = arith.constant 0 : index
    %c0_56 = arith.constant 0 : index
    %c4 = arith.constant 4 : index
    %67 = vector.load %arg3[%c0_54, %c0_55, %c0_56, %c4] : memref<1x1x4x384xbf16, #tpu.memory_space<vmem>>, vector<1x1x4x256xbf16>
    %68 = vector.shape_cast %67 : vector<1x1x4x256xbf16> to vector<4x256xbf16>
    %c9_i32_57 = arith.constant 9 : i32
    %69 = arith.muli %arg2, %c9_i32_57 : i32
    %c0_i32_58 = arith.constant 0 : i32
    %70 = arith.addi %69, %c0_i32_58 : i32
    %c2_i32 = arith.constant 2 : i32
    %71 = arith.addi %70, %c2_i32 : i32
    %72 = arith.index_cast %71 : i32 to index
    %c0_59 = arith.constant 0 : index
    %c0_60 = arith.constant 0 : index
    %73 = vector.load %arg4[%72, %c0_59, %c0_60] : memref<27x8x4xbf16, #tpu.memory_space<vmem>>, vector<1x8x4xbf16>
    %74 = vector.shape_cast %73 : vector<1x8x4xbf16> to vector<8x4xbf16>
    %cst_61 = arith.constant dense<0.000000e+00> : vector<8x256xf32>
    %75 = tpu.matmul %74, %68, %cst_61 {dimension_numbers = #tpu.dot_dimension_numbers<[1], [0], [0], [1], [0, 0, 1, 1], [], []>} : vector<8x4xbf16>, vector<4x256xbf16>, vector<8x256xf32> -> vector<8x256xf32>
    %c0_62 = arith.constant 0 : index
    %c0_63 = arith.constant 0 : index
    %c0_64 = arith.constant 0 : index
    %c36 = arith.constant 36 : index
    %76 = vector.load %arg3[%c0_62, %c0_63, %c0_64, %c36] : memref<1x1x4x384xbf16, #tpu.memory_space<vmem>>, vector<1x1x4x256xbf16>
    %77 = vector.shape_cast %76 : vector<1x1x4x256xbf16> to vector<4x256xbf16>
    %c9_i32_65 = arith.constant 9 : i32
    %78 = arith.muli %arg2, %c9_i32_65 : i32
    %c3_i32_66 = arith.constant 3 : i32
    %79 = arith.addi %78, %c3_i32_66 : i32
    %c2_i32_67 = arith.constant 2 : i32
    %80 = arith.addi %79, %c2_i32_67 : i32
    %81 = arith.index_cast %80 : i32 to index
    %c0_68 = arith.constant 0 : index
    %c0_69 = arith.constant 0 : index
    %82 = vector.load %arg4[%81, %c0_68, %c0_69] : memref<27x8x4xbf16, #tpu.memory_space<vmem>>, vector<1x8x4xbf16>
    %83 = vector.shape_cast %82 : vector<1x8x4xbf16> to vector<8x4xbf16>
    %cst_70 = arith.constant dense<0.000000e+00> : vector<8x256xf32>
    %84 = tpu.matmul %83, %77, %cst_70 {dimension_numbers = #tpu.dot_dimension_numbers<[1], [0], [0], [1], [0, 0, 1, 1], [], []>} : vector<8x4xbf16>, vector<4x256xbf16>, vector<8x256xf32> -> vector<8x256xf32>
    %85 = arith.addf %75, %84 : vector<8x256xf32>
    %c0_71 = arith.constant 0 : index
    %c0_72 = arith.constant 0 : index
    %c0_73 = arith.constant 0 : index
    %c68 = arith.constant 68 : index
    %86 = vector.load %arg3[%c0_71, %c0_72, %c0_73, %c68] : memref<1x1x4x384xbf16, #tpu.memory_space<vmem>>, vector<1x1x4x256xbf16>
    %87 = vector.shape_cast %86 : vector<1x1x4x256xbf16> to vector<4x256xbf16>
    %c9_i32_74 = arith.constant 9 : i32
    %88 = arith.muli %arg2, %c9_i32_74 : i32
    %c6_i32_75 = arith.constant 6 : i32
    %89 = arith.addi %88, %c6_i32_75 : i32
    %c2_i32_76 = arith.constant 2 : i32
    %90 = arith.addi %89, %c2_i32_76 : i32
    %91 = arith.index_cast %90 : i32 to index
    %c0_77 = arith.constant 0 : index
    %c0_78 = arith.constant 0 : index
    %92 = vector.load %arg4[%91, %c0_77, %c0_78] : memref<27x8x4xbf16, #tpu.memory_space<vmem>>, vector<1x8x4xbf16>
    %93 = vector.shape_cast %92 : vector<1x8x4xbf16> to vector<8x4xbf16>
    %cst_79 = arith.constant dense<0.000000e+00> : vector<8x256xf32>
    %94 = tpu.matmul %93, %87, %cst_79 {dimension_numbers = #tpu.dot_dimension_numbers<[1], [0], [0], [1], [0, 0, 1, 1], [], []>} : vector<8x4xbf16>, vector<4x256xbf16>, vector<8x256xf32> -> vector<8x256xf32>
    %95 = arith.addf %85, %94 : vector<8x256xf32>
    %c2_80 = arith.constant 2 : index
    %c0_81 = arith.constant 0 : index
    %96 = vector.load %arg5[%c2_80, %c0_81] : memref<3x256xf32, #tpu.memory_space<vmem>>, vector<1x256xf32>
    %97 = vector.broadcast %96 : vector<1x256xf32> to vector<8x256xf32>
    %98 = arith.mulf %95, %97 : vector<8x256xf32>
    %99 = arith.addf %66, %98 : vector<8x256xf32>
    %c0_82 = arith.constant 0 : index
    %c0_83 = arith.constant 0 : index
    %100 = vector.load %arg9[%c0_82, %c0_83] : memref<8x256xf32, #tpu.memory_space<vmem>>, vector<8x256xf32>
    tpu.vector_store %arg9[%c0_82, %c0_83], %99 {strides = array<i32>} : memref<8x256xf32, #tpu.memory_space<vmem>>, vector<8x256xf32>,
    %c2_i32_84 = arith.constant 2 : i32
    %101 = arith.cmpi eq, %arg2, %c2_i32_84 : i32
    %102 = arith.extui %101 : i1 to i32
    %c0_i32_85 = arith.constant 0 : i32
    %103 = arith.cmpi ne, %102, %c0_i32_85 : i32
    scf.if %103 {
      %104 = arith.truncf %99 : vector<8x256xf32> to vector<8x256xbf16>
      %c0_86 = arith.constant 0 : index
      %c0_87 = arith.constant 0 : index
      %c0_88 = arith.constant 0 : index
      %c0_89 = arith.constant 0 : index
      %105 = vector.load %arg6[%c0_86, %c0_87, %c0_88, %c0_89] : memref<1x1x8x256xbf16, #tpu.memory_space<vmem>>, vector<1x1x8x256xbf16>
      %106 = vector.shape_cast %105 : vector<1x1x8x256xbf16> to vector<8x256xbf16>
      %107 = vector.shape_cast %104 : vector<8x256xbf16> to vector<1x1x8x256xbf16>
      tpu.vector_store %arg6[%c0_86, %c0_87, %c0_88, %c0_89], %107 {strides = array<i32>} : memref<1x1x8x256xbf16, #tpu.memory_space<vmem>>, vector<1x1x8x256xbf16>,
      %cst_90 = arith.constant dense<0.000000e+00> : vector<8xf32>
      %108 = vector.multi_reduction <add>, %99, %cst_90 [1] : vector<8x256xf32> to vector<8xf32>
      %109 = vector.shape_cast %108 : vector<8xf32> to vector<8x1xf32>
      %cst_91 = arith.constant 3.906250e-03 : f32
      %110 = vector.broadcast %cst_91 : f32 to vector<8x1xf32>
      %111 = arith.mulf %109, %110 : vector<8x1xf32>
      %112 = vector.broadcast %111 : vector<8x1xf32> to vector<8x256xf32>
      %113 = arith.subf %99, %112 : vector<8x256xf32>
      %c0_92 = arith.constant 0 : index
      %c0_93 = arith.constant 0 : index
      %c0_94 = arith.constant 0 : index
      %c0_95 = arith.constant 0 : index
      %114 = vector.load %arg7[%c0_92, %c0_93, %c0_94, %c0_95] : memref<1x1x8x1xf32, #tpu.memory_space<vmem>>, vector<1x1x8x1xf32>
      %115 = vector.shape_cast %114 : vector<1x1x8x1xf32> to vector<8x1xf32>
      %116 = vector.shape_cast %109 : vector<8x1xf32> to vector<1x1x8x1xf32>
      tpu.vector_store %arg7[%c0_92, %c0_93, %c0_94, %c0_95], %116 {strides = array<i32>} : memref<1x1x8x1xf32, #tpu.memory_space<vmem>>, vector<1x1x8x1xf32>,
      %117 = arith.mulf %113, %113 : vector<8x256xf32>
      %cst_96 = arith.constant dense<0.000000e+00> : vector<8xf32>
      %118 = vector.multi_reduction <add>, %117, %cst_96 [1] : vector<8x256xf32> to vector<8xf32>
      %119 = vector.shape_cast %118 : vector<8xf32> to vector<8x1xf32>
      %c0_97 = arith.constant 0 : index
      %c0_98 = arith.constant 0 : index
      %c0_99 = arith.constant 0 : index
      %c0_100 = arith.constant 0 : index
      %120 = vector.load %arg8[%c0_97, %c0_98, %c0_99, %c0_100] : memref<1x1x8x1xf32, #tpu.memory_space<vmem>>, vector<1x1x8x1xf32>
      %121 = vector.shape_cast %120 : vector<1x1x8x1xf32> to vector<8x1xf32>
      %122 = vector.shape_cast %119 : vector<8x1xf32> to vector<1x1x8x1xf32>
      tpu.vector_store %arg8[%c0_97, %c0_98, %c0_99, %c0_100], %122 {strides = array<i32>} : memref<1x1x8x1xf32, #tpu.memory_space<vmem>>, vector<1x1x8x1xf32>,
    } else {
    }
    return
  }
  func.func @transform_0(%arg0: i32, %arg1: i32, %arg2: i32) -> (i32, i32, i32, i32) {
    %c2_i32 = arith.constant 2 : i32
    %0 = arith.muli %arg2, %c2_i32 : i32
    %1 = arith.addi %arg1, %0 : i32
    %c0_i32 = arith.constant 0 : i32
    %c0_i32_0 = arith.constant 0 : i32
    %c0_i32_1 = arith.constant 0 : i32
    return %arg0, %1, %c0_i32, %c0_i32_0 : i32, i32, i32, i32
  }
  func.func @transform_1(%arg0: i32, %arg1: i32, %arg2: i32) -> (i32, i32, i32) {
    %c0_i32 = arith.constant 0 : i32
    %c0_i32_0 = arith.constant 0 : i32
    %c0_i32_1 = arith.constant 0 : i32
    %c0_i32_2 = arith.constant 0 : i32
    return %c0_i32, %c0_i32_0, %c0_i32_1 : i32, i32, i32
  }
  func.func @transform_2(%arg0: i32, %arg1: i32, %arg2: i32) -> (i32, i32) {
    %c0_i32 = arith.constant 0 : i32
    %c0_i32_0 = arith.constant 0 : i32
    %c0_i32_1 = arith.constant 0 : i32
    return %c0_i32, %c0_i32_0 : i32, i32
  }
  func.func @transform_3(%arg0: i32, %arg1: i32, %arg2: i32) -> (i32, i32, i32, i32) {
    %c0_i32 = arith.constant 0 : i32
    %c0_i32_0 = arith.constant 0 : i32
    %c0_i32_1 = arith.constant 0 : i32
    return %arg0, %arg1, %c0_i32, %c0_i32_0 : i32, i32, i32, i32
  }
  func.func @transform_4(%arg0: i32, %arg1: i32, %arg2: i32) -> (i32, i32, i32, i32) {
    %c0_i32 = arith.constant 0 : i32
    %c0_i32_0 = arith.constant 0 : i32
    %c0_i32_1 = arith.constant 0 : i32
    return %arg0, %arg1, %c0_i32, %c0_i32_0 : i32, i32, i32, i32
  }
  func.func @transform_5(%arg0: i32, %arg1: i32, %arg2: i32) -> (i32, i32, i32, i32) {
    %c0_i32 = arith.constant 0 : i32
    %c0_i32_0 = arith.constant 0 : i32
    %c0_i32_1 = arith.constant 0 : i32
    return %arg0, %arg1, %c0_i32, %c0_i32_0 : i32, i32, i32, i32
  }
}

</mosaic_0001>

<llo_original>
// kernel: tpu_custom_call.1
$region0: #{tpu_custom_call.1}
  #allocation0 [shape = 'u32[]', space=smem, size = 0x4, offset = 0x4, fixed_abs, tag = 'smem constant byte address 0x4 - core index']
  #allocation1 [shape = 'u32[144,128]{1,0:T(1,128)}', space=vmem, size = 0x12000, scoped, tag = 'internal scratch']
  #allocation2 [shape = 'f32[8,256]{1,0:T(8,128)}', space=vmem, size = 0x2000, scoped, tag = 'scratch operand']
  %s0 = inlined_call_operand.hbm [shape: bf16[2,12,4,384], index: 0, kind: input, shape index: {}]
  %s1 = inlined_call_operand.vmem [shape: bf16[27,8,4], index: 1, kind: input, shape index: {}]
  %s2 = inlined_call_operand.vmem [shape: f32[3,256], index: 2, kind: input, shape index: {}]
  %s3 = inlined_call_operand.hbm [shape: bf16[2,8,8,256], index: 3, kind: output, shape index: {0}]
  %s4 = inlined_call_operand.vmem [shape: f32[2,8,8,1], index: 4, kind: output, shape index: {1}]
  %s5 = inlined_call_operand.vmem [shape: f32[2,8,8,1], index: 5, kind: output, shape index: {2}]
  %6 = xla_tuple %s3, %s4, %s5
  %s7 = sld [smem:[#allocation0]]
  $region73: #{tpu_custom_call.1} parent=0
    _
  %s9 = ssub.s32 1, %s7
  %s10 = scalar_select 0, %s9, %s7
  $region1: #{tpu_custom_call.1} parent=0
    #allocation3 [shape = 'u8[6144]{0}', space=vmem, size = 0x1800, scoped, tag = 'input window, operand 0']
    #allocation4 [shape = 's32[2]{0}', space=sflag, size = 0x8, scoped, tag = 'scoped memory for tpu_custom_call.1']
    #allocation5 [shape = 's32[2]{0}', space=sflag, size = 0x8, scoped, tag = 'scoped memory for tpu_custom_call.1']
    #allocation6 [shape = 'u8[8192]{0}', space=vmem, size = 0x2000, scoped, tag = 'output window, operand 0']
    %11 = vsyncpa [#allocation4], 0
    %s12 = scalar_lea.sflag [#allocation4], 1
    %13 = vsyncpa %s12, 0
    %14 = vsyncpa [#allocation5], 0
    %s15 = scalar_lea.sflag [#allocation5], 1
    %16 = vsyncpa %s15, 0
    loop: start=0, step=1, limit=50
    $region2: #{tpu_custom_call.1} parent=1 // loop_pre_header
      _
    $region3: #{tpu_custom_call.1} parent=1 // loop_header
      %s18 = sphi 0, %s22
      %p19 = scmp.ge.s32.totalorder %s18, 50
      %s25 = sphi 0, %s44
      %s26 = sphi 0, %s40
      %s27 = sphi 0, %s36
      %s28 = sphi 0, %s25
      %s29 = sphi 0, %s26
      %s30 = sphi 0, %s27
      %s31 = sphi 0, %s28
      %s32 = sphi 0, %s29
      %s33 = sphi 0, %s30
      %s53 = sphi 0, %s55
      %s56 = sphi 0, %s53
      %s57 = sphi 0, %s56
      %s73 = sphi 0, %s57
      %s77 = sphi 0, %s77
      %s79 = sphi 0, %s77
      %s80 = sphi 0, %s79
      %s94 = sphi 0, %s80
      %s98 = sphi 0, %s98
      %s100 = sphi 0, %s98
      %s101 = sphi 0, %s100
      %s115 = sphi 0, %s101
      %s123 = sphi 0, %s125
      %s126 = sphi 0, %s123
      %s127 = sphi 0, %s126
      %s143 = sphi 0, %s127
      %s151 = sphi 0, %s153
      %s154 = sphi 0, %s151
      %s155 = sphi 0, %s154
      %s171 = sphi 0, %s155
      %s179 = sphi 0, %s181
      %s182 = sphi 0, %s179
      %s183 = sphi 0, %s182
      %s199 = sphi 0, %s183
    $region4: #{tpu_custom_call.1} parent=1 // loop_header_branch
      %21 = sbr.rel (%p19) target = $region8
    $region5: #{tpu_custom_call.1} parent=1 // loop_body
      %s23 = ssub.s32 %s18, 1
      %s24 = ssub.s32 %s18, 2
      %s34 = sadd.s32 1, %s27
      %p35 = scmp.ge.s32.totalorder %s34, 3
      %s36 = scalar_select %p35, 0, %s34
      %s37 = sadd.s32 1, %s26
      %s38 = scalar_select %p35, %s37, %s26
      %p39 = scmp.ge.s32.totalorder %s38, 8
      %s40 = scalar_select %p39, 0, %s38
      %s41 = sadd.s32 1, %s25
      %s42 = scalar_select %p39, %s41, %s25
      %p43 = scmp.ge.s32.totalorder %s42, 2
      %s44 = scalar_select %p43, 0, %s42
      %s45 = smul.u32 %s27, 2
      %s46 = sadd.s32 %s26, %s45
      %s47 = smul.u32 %s36, 2
      %s48 = sadd.s32 %s40, %s47
      %s49 = ssub.s32 %s25, %s44
      %s50 = ssub.s32 %s46, %s48
      %s51 = sor.u32 %s49, %s50
      %p52 = scmp.eq.s32.totalorder %s51, 0
      %s54 = sadd.s32 %s53, 1
      %s55 = scalar_select %p52, %s53, %s54
      %p58 = pneg %p52
      %p59 = scmp.eq.s32.totalorder %s18, 47
      %p60 = por %p58, %p59
      %p61 = scmp.ne.s32.totalorder %s53, %s56
      %p62 = scmp.eq.s32.totalorder %s18, 0
      %p63 = por %p61, %p62
      %p64 = scmp.ne.s32.totalorder %s53, %s56
      %p65 = scmp.eq.s32.totalorder %s23, 47
      %p66 = por %p64, %p65
      %p67 = scmp.ne.s32.totalorder %s56, %s57
      %p68 = scmp.eq.s32.totalorder %s23, 0
      %p69 = por %p67, %p68
      %p70 = scmp.ne.s32.totalorder %s56, %s57
      %p71 = scmp.eq.s32.totalorder %s24, 47
      %p72 = por %p70, %p71
      %p74 = scmp.ne.s32.totalorder %s57, %s73
      %p75 = scmp.eq.s32.totalorder %s24, 0
      %p76 = por %p74, %p75
      %s78 = sadd.s32 %s77, 1
      %p81 = scmp.eq.s32.totalorder %s18, 47
      %p82 = scmp.ne.s32.totalorder %s77, %s79
      %p83 = scmp.eq.s32.totalorder %s18, 0
      %p84 = por %p82, %p83
      %p85 = scmp.ne.s32.totalorder %s77, %s79
      %p86 = scmp.eq.s32.totalorder %s23, 47
      %p87 = por %p85, %p86
      %p88 = scmp.ne.s32.totalorder %s79, %s80
      %p89 = scmp.eq.s32.totalorder %s23, 0
      %p90 = por %p88, %p89
      %p91 = scmp.ne.s32.totalorder %s79, %s80
      %p92 = scmp.eq.s32.totalorder %s24, 47
      %p93 = por %p91, %p92
      %p95 = scmp.ne.s32.totalorder %s80, %s94
      %p96 = scmp.eq.s32.totalorder %s24, 0
      %p97 = por %p95, %p96
      %s99 = sadd.s32 %s98, 1
      %p102 = scmp.eq.s32.totalorder %s18, 47
      %p103 = scmp.ne.s32.totalorder %s98, %s100
      %p104 = scmp.eq.s32.totalorder %s18, 0
      %p105 = por %p103, %p104
      %p106 = scmp.ne.s32.totalorder %s98, %s100
      %p107 = scmp.eq.s32.totalorder %s23, 47
      %p108 = por %p106, %p107
      %p109 = scmp.ne.s32.totalorder %s100, %s101
      %p110 = scmp.eq.s32.totalorder %s23, 0
      %p111 = por %p109, %p110
      %p112 = scmp.ne.s32.totalorder %s100, %s101
      %p113 = scmp.eq.s32.totalorder %s24, 47
      %p114 = por %p112, %p113
      %p116 = scmp.ne.s32.totalorder %s101, %s115
      %p117 = scmp.eq.s32.totalorder %s24, 0
      %p118 = por %p116, %p117
      %s119 = ssub.s32 %s25, %s44
      %s120 = ssub.s32 %s26, %s40
      %s121 = sor.u32 %s119, %s120
      %p122 = scmp.eq.s32.totalorder %s121, 0
      %s124 = sadd.s32 %s123, 1
      %s125 = scalar_select %p122, %s123, %s124
      %p128 = pneg %p122
      %p129 = scmp.eq.s32.totalorder %s18, 47
      %p130 = por %p128, %p129
      %p131 = scmp.ne.s32.totalorder %s123, %s126
      %p132 = scmp.eq.s32.totalorder %s18, 0
      %p133 = por %p131, %p132
      %p134 = scmp.ne.s32.totalorder %s123, %s126
      %p135 = scmp.eq.s32.totalorder %s23, 47
      %p136 = por %p134, %p135
      %p137 = scmp.ne.s32.totalorder %s126, %s127
      %p138 = scmp.eq.s32.totalorder %s23, 0
      %p139 = por %p137, %p138
      %p140 = scmp.ne.s32.totalorder %s126, %s127
      %p141 = scmp.eq.s32.totalorder %s24, 47
      %p142 = por %p140, %p141
      %p144 = scmp.ne.s32.totalorder %s127, %s143
      %p145 = scmp.eq.s32.totalorder %s24, 0
      %p146 = por %p144, %p145
      %s147 = ssub.s32 %s25, %s44
      %s148 = ssub.s32 %s26, %s40
      %s149 = sor.u32 %s147, %s148
      %p150 = scmp.eq.s32.totalorder %s149, 0
      %s152 = sadd.s32 %s151, 1
      %s153 = scalar_select %p150, %s151, %s152
      %p156 = pneg %p150
      %p157 = scmp.eq.s32.totalorder %s18, 47
      %p158 = por %p156, %p157
      %p159 = scmp.ne.s32.totalorder %s151, %s154
      %p160 = scmp.eq.s32.totalorder %s18, 0
      %p161 = por %p159, %p160
      %p162 = scmp.ne.s32.totalorder %s151, %s154
      %p163 = scmp.eq.s32.totalorder %s23, 47
      %p164 = por %p162, %p163
      %p165 = scmp.ne.s32.totalorder %s154, %s155
      %p166 = scmp.eq.s32.totalorder %s23, 0
      %p167 = por %p165, %p166
      %p168 = scmp.ne.s32.totalorder %s154, %s155
      %p169 = scmp.eq.s32.totalorder %s24, 47
      %p170 = por %p168, %p169
      %p172 = scmp.ne.s32.totalorder %s155, %s171
      %p173 = scmp.eq.s32.totalorder %s24, 0
      %p174 = por %p172, %p173
      %s175 = ssub.s32 %s25, %s44
      %s176 = ssub.s32 %s26, %s40
      %s177 = sor.u32 %s175, %s176
      %p178 = scmp.eq.s32.totalorder %s177, 0
      %s180 = sadd.s32 %s179, 1
      %s181 = scalar_select %p178, %s179, %s180
      %p184 = pneg %p178
      %p185 = scmp.eq.s32.totalorder %s18, 47
      %p186 = por %p184, %p185
      %p187 = scmp.ne.s32.totalorder %s179, %s182
      %p188 = scmp.eq.s32.totalorder %s18, 0
      %p189 = por %p187, %p188
      %p190 = scmp.ne.s32.totalorder %s179, %s182
      %p191 = scmp.eq.s32.totalorder %s23, 47
      %p192 = por %p190, %p191
      %p193 = scmp.ne.s32.totalorder %s182, %s183
      %p194 = scmp.eq.s32.totalorder %s23, 0
      %p195 = por %p193, %p194
      %p196 = scmp.ne.s32.totalorder %s182, %s183
      %p197 = scmp.eq.s32.totalorder %s24, 47
      %p198 = por %p196, %p197
      %p200 = scmp.ne.s32.totalorder %s183, %s199
      %p201 = scmp.eq.s32.totalorder %s24, 0
      %p202 = por %p200, %p201
      %p203 = scmp.le.s32.totalorder 1, %s18
      %p204 = scmp.lt.s32.totalorder %s18, 49
      %p205 = pnand %p203, %p204
      %p206 = pneg %p205
      // Predicated region
      $region9: #{tpu_custom_call.1} parent=5 // pred_check
        _
      $region10: #{tpu_custom_call.1} parent=5 // pred_check_branch
        %208 = sbr.rel (%p205) target = $region12
      $region11: #{tpu_custom_call.1} parent=5 // pred_region
        %s209 = ssub.s32 %s18, 1
        // Predicated region
        $region13: #{tpu_custom_call.1} parent=11 // pred_check
          %p210 = pneg %p90
        $region14: #{tpu_custom_call.1} parent=11 // pred_check_branch
          %212 = sbr.rel (%p210) target = $region16
        $region15: #{tpu_custom_call.1} parent=11 // pred_region
          _
        $region16: #{tpu_custom_call.1} parent=11 // pred_fallthru
          _
        // Predicated region
        $region17: #{tpu_custom_call.1} parent=11 // pred_check
          %p213 = pneg %p111
        $region18: #{tpu_custom_call.1} parent=11 // pred_check_branch
          %215 = sbr.rel (%p213) target = $region20
        $region19: #{tpu_custom_call.1} parent=11 // pred_region
          _
        $region20: #{tpu_custom_call.1} parent=11 // pred_fallthru
          _
      $region12: #{tpu_custom_call.1} parent=5 // pred_fallthru
        _
      %p216 = scmp.lt.s32.totalorder %s18, 48
      // Predicated region
      $region21: #{tpu_custom_call.1} parent=5 // pred_check
        %p217 = pneg %p216
      $region22: #{tpu_custom_call.1} parent=5 // pred_check_branch
        %219 = sbr.rel (%p217) target = $region24
      $region23: #{tpu_custom_call.1} parent=5 // pred_region
        // Predicated region
        $region25: #{tpu_custom_call.1} parent=23 // pred_check
          %p220 = pneg %p63
        $region26: #{tpu_custom_call.1} parent=23 // pred_check_branch
          %222 = sbr.rel (%p220) target = $region28
        $region27: #{tpu_custom_call.1} parent=23 // pred_region
          %s223 = sand.u32 %s53, 1
          %s224 = scalar_lea.sflag [#allocation4], %s223
          %s225 = sand.u32 %s53, 1
          %s226 = smul.addr %s225, 6
          %s227 = scalar_lea.vmem [#allocation3], %s226
          %s228 = smul.u32 %s27, 2
          %s229 = sadd.s32 %s26, %s228
          %s231 = ssub.s32 96, 96
          %232 = vsyncadd %s224, %s231
          %s233 = smul.addr %s229, 3
          %s234 = smul.addr %s25, 36
          %s235 = sadd.s32 %s233, %s234
          %s236 = smul.addr %s235, 32
          %s237 = scalar_lea.hbm %s0, %s236
          %s239 = sshll.u32 %s227, 4
          %s240 = int_to_ptr.vmem [resolvable:$true] %s239
          %242 = dma.hbm_to_vmem [thread:$0]  %s237, 96, %s240, %s224
        $region28: #{tpu_custom_call.1} parent=23 // pred_fallthru
          _
      $region24: #{tpu_custom_call.1} parent=5 // pred_fallthru
        _
      %p243 = scmp.le.s32.totalorder 1, %s18
      %p244 = scmp.lt.s32.totalorder %s18, 49
      %p245 = pnand %p243, %p244
      %p246 = pneg %p245
      // Predicated region
      $region29: #{tpu_custom_call.1} parent=5 // pred_check
        _
      $region30: #{tpu_custom_call.1} parent=5 // pred_check_branch
        %248 = sbr.rel (%p245) target = $region32
      $region31: #{tpu_custom_call.1} parent=5 // pred_region
        %s249 = ssub.s32 %s18, 1
        %s250 = sand.u32 %s56, 1
        %s251 = scalar_lea.sflag [#allocation4], %s250
        %s252 = sand.u32 %s56, 1
        %s253 = smul.addr %s252, 6
        %s254 = scalar_lea.vmem [#allocation3], %s253
        // Predicated region
        $region33: #{tpu_custom_call.1} parent=31 // pred_check
          %p255 = pneg %p69
        $region34: #{tpu_custom_call.1} parent=31 // pred_check_branch
          %257 = sbr.rel (%p255) target = $region36
        $region35: #{tpu_custom_call.1} parent=31 // pred_region
          %258 = dma.done %s251, 96
        $region36: #{tpu_custom_call.1} parent=31 // pred_fallthru
          _
        %s259 = sand.u32 %s56, 1
        %s260 = scalar_lea.sflag [#allocation4], %s259
        %s261 = sand.u32 %s56, 1
        %s262 = smul.addr %s261, 6
        %s263 = scalar_lea.vmem [#allocation3], %s262
        %p264 = pneg %p69
        %p265 = pneg %p66
        %p266 = pneg %p90
        %p267 = pneg %p87
        %p268 = pneg %p111
        %p269 = pneg %p108
        %p270 = pneg %p139
        %p271 = pneg %p136
        %s272 = sand.u32 %s126, 1
        %s273 = scalar_lea.sflag [#allocation5], %s272
        %s274 = sand.u32 %s126, 1
        %s275 = smul.addr %s274, 8
        %s276 = scalar_lea.vmem [#allocation6], %s275
        %p277 = pneg %p167
        %p278 = pneg %p164
        %p279 = scmp.lt.s32.totalorder %s28, 1
        %s280 = scalar_select %p279, %s28, 1
        %p281 = scmp.lt.s32.totalorder %s29, 7
        %s282 = scalar_select %p281, %s29, 7
        %s283 = smul.addr %s280, 8
        %s284 = sadd.s32 %s282, %s283
        %s285 = smul.addr %s284, 8
        %s286 = scalar_lea.vmem %s4, %s285
        %p287 = pneg %p195
        %p288 = pneg %p192
        %p289 = scmp.lt.s32.totalorder %s28, 1
        %s290 = scalar_select %p289, %s28, 1
        %p291 = scmp.lt.s32.totalorder %s29, 7
        %s292 = scalar_select %p291, %s29, 7
        %s293 = smul.addr %s290, 8
        %s294 = sadd.s32 %s292, %s293
        %s295 = smul.addr %s294, 8
        %s296 = scalar_lea.vmem %s5, %s295
        %s297 = smul.u32 %s30, 2
        %s298 = sadd.s32 %s29, %s297
        %p299 = scmp.lt.s32.totalorder %s28, 1
        %s300 = scalar_select %p299, %s28, 1
        %p301 = scmp.lt.s32.totalorder %s29, 7
        %s302 = scalar_select %p301, %s29, 7
        %s303 = smul.addr %s300, 8
        %s304 = sadd.s32 %s302, %s303
        %s305 = smul.addr %s304, 8
        %s306 = scalar_lea.vmem %s4, %s305
        %p307 = scmp.lt.s32.totalorder %s28, 1
        %s308 = scalar_select %p307, %s28, 1
        %p309 = scmp.lt.s32.totalorder %s29, 7
        %s310 = scalar_select %p309, %s29, 7
        %s311 = smul.addr %s308, 8
        %s312 = sadd.s32 %s310, %s311
        %s313 = smul.addr %s312, 8
        %s314 = scalar_lea.vmem %s5, %s313
        %p316 = scmp.eq.s32.totalorder %s30, 0
        // Predicated region
        $region37: #{tpu_custom_call.1} parent=31 // pred_check
          %p317 = pneg %p316
        $region38: #{tpu_custom_call.1} parent=31 // pred_check_branch
          %319 = sbr.rel (%p317) target = $region40
        $region39: #{tpu_custom_call.1} parent=31 // pred_region
          %320 = vst [vmem:[#allocation2] sm:$0xff] 0.0
          %321 = vst [vmem:[#allocation2 + $0x8] sm:$0xff] 0.0
        $region40: #{tpu_custom_call.1} parent=31 // pred_fallthru
          _
        %v322 = vld [vmem:[#allocation2] sm:$0xff]
        %v323 = vld [vmem:[#allocation2 + $0x8] sm:$0xff]
        %v324 = vld [vmem:[%s254] sm:$0xf]
        %s325 = smul.u32 %s30, 9
        %s326 = smul.addr %s325, 4
        %s327 = scalar_lea.vmem %s1, %s326
        %v328 = vld [vmem:[%s327] sm:$0xf]
        %v329 = vld [vmem:[%s254] sm:$0x3f]
        %s330 = sadd.s32 %s325, 3
        %s331 = smul.addr %s330, 4
        %s332 = scalar_lea.vmem %s1, %s331
        %v333 = vld [vmem:[%s332] sm:$0xf]
        %v335 = vcombine.high %v329, %v329
        %v337 = vunpack.c.l.s4 1983009808
        %v338 = vunpack.c.0.s8 %v337
        %v339 = vlaneseq
        %v340 = vshrl.u32 %v339, 7
        %v341 = vsub.s32 %v338, %v340
        %v342 = vrot.slane %v329, %v341
        %v344 = vunpack.c.l.s4 1983009808
        %v345 = vunpack.c.0.s8 %v344
        %v346 = vlaneseq
        %v347 = vshrl.u32 %v346, 7
        %v348 = vsub.s32 %v345, %v347
        %v349 = vrot.slane %v335, %v348
        %v350 = vcombine.high %v342, %v342
        %351 = vrot.lane.b32.xlu0 %v342, 96
        %v352 = vpop.permute.xlu0 %351
        %353 = vrot.lane.b32.xlu0 %v350, 96
        %v354 = vpop.permute.xlu0 %353
        %355 = vrot.lane.b32.xlu0 %v349, 96
        %v356 = vpop.permute.xlu0 %355
        %vm357 = vcmask 785408
        %v358 = vsel %vm357, %v352, %v354
        %v359 = vsel %vm357, %v354, %v356
        %vm360 = vcmask 31744
        %v362 = vsel %vm360, %v333, 0
        %vm364 = vcmask 1041408
        %v366 = vsel %vm364, %v358, 0
        %v369 = vsel %vm364, %v359, 0
        %371 = vmatprep.subr.bf16.mxu0 %v369
        %372 = vmatpush1.bf16.msra.mxu0 %v366
        %373 = vmatprep.subr.bf16.mxu0 0
        %374 = vmatpush1.bf16.msra.mxu0 0
        %375 = vmatprep.subr.bf16.mxu0 0
        %376 = vmatpush1.bf16.msra.mxu0 0
        %377 = vmatprep.subr.bf16.mxu0 0
        %378 = vmatpush1.bf16.msra.mxu0 0
        %379 = vmatprep.subr.bf16.mxu0 0
        %380 = vmatpush1.bf16.msra.mxu0 0
        %381 = vmatprep.subr.bf16.mxu0 0
        %382 = vmatpush1.bf16.msra.mxu0 0
        %383 = vmatprep.subr.bf16.mxu0 0
        %384 = vmatpush1.bf16.msra.mxu0 0
        %385 = vmatprep.subr.bf16.mxu0 0
        %386 = vmatpush1.bf16.msra.mxu0 0
        %387 = vmatprep.subr.bf16.mxu0 0
        %388 = vmatpush1.bf16.msra.mxu0 0
        %389 = vmatprep.subr.bf16.mxu0 0
        %390 = vmatpush1.bf16.msra.mxu0 0
        %391 = vmatprep.subr.bf16.mxu0 0
        %392 = vmatpush1.bf16.msra.mxu0 0
        %393 = vmatprep.subr.bf16.mxu0 0
        %394 = vmatpush1.bf16.msra.mxu0 0
        %395 = vmatprep.subr.bf16.mxu0 0
        %396 = vmatpush1.bf16.msra.mxu0 0
        %397 = vmatprep.subr.bf16.mxu0 0
        %398 = vmatpush1.bf16.msra.mxu0 0
        %399 = vmatprep.subr.bf16.mxu0 0
        %400 = vmatpush1.bf16.msra.mxu0 0
        %401 = vmatprep.subr.bf16.mxu0 0
        %402 = vmatpush1.bf16.msra.mxu0 0
        %403 = vmatprep.mubr.bf16.mxu0 0
        %404 = vmatmul.mubr.bf16.gmra.mrb[0].mxu0 %v362
        %v405 = vpop.f32.mrb[0].mxu0
        %v406 = vadd.f32 0.0, %v405
        %v407 = vpop.f32.mrb[0].mxu0
        %v408 = vadd.f32 0.0, %v407
        %v409 = vpop.f32.mrb[0].mxu0
        %v410 = vpop.f32.mrb[0].mxu0
        %411 = vdwg.mxu0
        %v414 = vunpack.c.l.s4 1983009808
        %v415 = vunpack.c.0.s8 %v414
        %v416 = vlaneseq
        %v417 = vshrl.u32 %v416, 7
        %v418 = vsub.s32 %v415, %v417
        %v419 = vrot.slane %v324, %v418
        %v420 = vcombine.high %v419, %v419
        %v422 = vsel %vm360, %v328, 0
        %v425 = vsel %vm364, %v419, 0
        %v428 = vsel %vm364, %v420, 0
        %430 = vmatprep.subr.bf16.mxu0 %v428
        %431 = vmatpush1.bf16.msra.mxu0 %v425
        %432 = vmatprep.subr.bf16.mxu0 0
        %433 = vmatpush1.bf16.msra.mxu0 0
        %434 = vmatprep.subr.bf16.mxu0 0
        %435 = vmatpush1.bf16.msra.mxu0 0
        %436 = vmatprep.subr.bf16.mxu0 0
        %437 = vmatpush1.bf16.msra.mxu0 0
        %438 = vmatprep.subr.bf16.mxu0 0
        %439 = vmatpush1.bf16.msra.mxu0 0
        %440 = vmatprep.subr.bf16.mxu0 0
        %441 = vmatpush1.bf16.msra.mxu0 0
        %442 = vmatprep.subr.bf16.mxu0 0
        %443 = vmatpush1.bf16.msra.mxu0 0
        %444 = vmatprep.subr.bf16.mxu0 0
        %445 = vmatpush1.bf16.msra.mxu0 0
        %446 = vmatprep.subr.bf16.mxu0 0
        %447 = vmatpush1.bf16.msra.mxu0 0
        %448 = vmatprep.subr.bf16.mxu0 0
        %449 = vmatpush1.bf16.msra.mxu0 0
        %450 = vmatprep.subr.bf16.mxu0 0
        %451 = vmatpush1.bf16.msra.mxu0 0
        %452 = vmatprep.subr.bf16.mxu0 0
        %453 = vmatpush1.bf16.msra.mxu0 0
        %454 = vmatprep.subr.bf16.mxu0 0
        %455 = vmatpush1.bf16.msra.mxu0 0
        %456 = vmatprep.subr.bf16.mxu0 0
        %457 = vmatpush1.bf16.msra.mxu0 0
        %458 = vmatprep.subr.bf16.mxu0 0
        %459 = vmatpush1.bf16.msra.mxu0 0
        %460 = vmatprep.subr.bf16.mxu0 0
        %461 = vmatpush1.bf16.msra.mxu0 0
        %462 = vmatprep.mubr.bf16.mxu0 0
        %463 = vmatmul.mubr.bf16.gmra.mrb[0].mxu0 %v422
        %v464 = vpop.f32.mrb[0].mxu0
        %v465 = vadd.f32 %v406, %v464
        %v466 = vpop.f32.mrb[0].mxu0
        %v467 = vadd.f32 %v408, %v466
        %v468 = vpop.f32.mrb[0].mxu0
        %v469 = vpop.f32.mrb[0].mxu0
        %470 = vdwg.mxu0
        %v471 = vld [vmem:[%s254] sm:$0x3f]
        %s472 = sadd.s32 %s325, 6
        %s473 = smul.addr %s472, 4
        %s474 = scalar_lea.vmem %s1, %s473
        %v475 = vld [vmem:[%s474] sm:$0xf]
        %v477 = vcombine.high %v471, %v471
        %v479 = vunpack.c.l.s4 1983009808
        %v480 = vunpack.c.0.s8 %v479
        %v481 = vlaneseq
        %v482 = vshrl.u32 %v481, 7
        %v483 = vsub.s32 %v480, %v482
        %v484 = vrot.slane %v471, %v483
        %v486 = vunpack.c.l.s4 1983009808
        %v487 = vunpack.c.0.s8 %v486
        %v488 = vlaneseq
        %v489 = vshrl.u32 %v488, 7
        %v490 = vsub.s32 %v487, %v489
        %v491 = vrot.slane %v477, %v490
        %v492 = vcombine.high %v484, %v484
        %493 = vrot.lane.b32.xlu0 %v484, 64
        %v494 = vpop.permute.xlu0 %493
        %495 = vrot.lane.b32.xlu0 %v492, 64
        %v496 = vpop.permute.xlu0 %495
        %497 = vrot.lane.b32.xlu0 %v491, 64
        %v498 = vpop.permute.xlu0 %497
        %vm499 = vcmask 523264
        %v500 = vsel %vm499, %v494, %v496
        %v501 = vsel %vm499, %v496, %v498
        %v503 = vsel %vm360, %v475, 0
        %v506 = vsel %vm364, %v500, 0
        %v509 = vsel %vm364, %v501, 0
        %511 = vmatprep.subr.bf16.mxu0 %v509
        %512 = vmatpush1.bf16.msra.mxu0 %v506
        %513 = vmatprep.subr.bf16.mxu0 0
        %514 = vmatpush1.bf16.msra.mxu0 0
        %515 = vmatprep.subr.bf16.mxu0 0
        %516 = vmatpush1.bf16.msra.mxu0 0
        %517 = vmatprep.subr.bf16.mxu0 0
        %518 = vmatpush1.bf16.msra.mxu0 0
        %519 = vmatprep.subr.bf16.mxu0 0
        %520 = vmatpush1.bf16.msra.mxu0 0
        %521 = vmatprep.subr.bf16.mxu0 0
        %522 = vmatpush1.bf16.msra.mxu0 0
        %523 = vmatprep.subr.bf16.mxu0 0
        %524 = vmatpush1.bf16.msra.mxu0 0
        %525 = vmatprep.subr.bf16.mxu0 0
        %526 = vmatpush1.bf16.msra.mxu0 0
        %527 = vmatprep.subr.bf16.mxu0 0
        %528 = vmatpush1.bf16.msra.mxu0 0
        %529 = vmatprep.subr.bf16.mxu0 0
        %530 = vmatpush1.bf16.msra.mxu0 0
        %531 = vmatprep.subr.bf16.mxu0 0
        %532 = vmatpush1.bf16.msra.mxu0 0
        %533 = vmatprep.subr.bf16.mxu0 0
        %534 = vmatpush1.bf16.msra.mxu0 0
        %535 = vmatprep.subr.bf16.mxu0 0
        %536 = vmatpush1.bf16.msra.mxu0 0
        %537 = vmatprep.subr.bf16.mxu0 0
        %538 = vmatpush1.bf16.msra.mxu0 0
        %539 = vmatprep.subr.bf16.mxu0 0
        %540 = vmatpush1.bf16.msra.mxu0 0
        %541 = vmatprep.subr.bf16.mxu0 0
        %542 = vmatpush1.bf16.msra.mxu0 0
        %543 = vmatprep.mubr.bf16.mxu0 0
        %544 = vmatmul.mubr.bf16.gmra.mrb[0].mxu0 %v503
        %v545 = vpop.f32.mrb[0].mxu0
        %v546 = vadd.f32 0.0, %v545
        %v547 = vpop.f32.mrb[0].mxu0
        %v548 = vadd.f32 0.0, %v547
        %v549 = vpop.f32.mrb[0].mxu0
        %v550 = vpop.f32.mrb[0].mxu0
        %551 = vdwg.mxu0
        %v552 = vadd.f32 %v465, %v546
        %v553 = vadd.f32 %v467, %v548
        %v554 = vld [vmem:[%s2] ss:$4 sm:$0x3]
        %v556 = vlaneseq
        %v557 = vshrl.u32 %v556, 7
        %v558 = vsub.s32 0, %v557
        %v559 = vrot.slane %v554, %v558
        %v560 = vlaneseq
        %v561 = vshrl.u32 %v560, 7
        %v562 = vsub.s32 1, %v561
        %v563 = vrot.slane %v554, %v562
        %v566 = vmul.f32 %v552, %v559
        %v567 = vmul.f32 %v553, %v563
        %v568 = vadd.f32 %v322, %v566
        %v569 = vadd.f32 %v323, %v567
        %v570 = vld [vmem:[%s254] sm:$0x3f]
        %s571 = sadd.s32 %s325, 1
        %s572 = smul.addr %s571, 4
        %s573 = scalar_lea.vmem %s1, %s572
        %v574 = vld [vmem:[%s573] sm:$0xf]
        %s575 = sadd.s32 %s325, 4
        %s576 = smul.addr %s575, 4
        %s577 = scalar_lea.vmem %s1, %s576
        %v578 = vld [vmem:[%s577] sm:$0xf]
        %v580 = vcombine.high %v570, %v570
        %v582 = vunpack.c.l.s4 1983009808
        %v583 = vunpack.c.0.s8 %v582
        %v584 = vlaneseq
        %v585 = vshrl.u32 %v584, 7
        %v586 = vsub.s32 %v583, %v585
        %v587 = vrot.slane %v570, %v586
        %v589 = vunpack.c.l.s4 1983009808
        %v590 = vunpack.c.0.s8 %v589
        %v591 = vlaneseq
        %v592 = vshrl.u32 %v591, 7
        %v593 = vsub.s32 %v590, %v592
        %v594 = vrot.slane %v580, %v593
        %v595 = vcombine.high %v587, %v587
        %596 = vrot.lane.b32.xlu0 %v587, 94
        %v597 = vpop.permute.xlu0 %596
        %598 = vrot.lane.b32.xlu0 %v595, 94
        %v599 = vpop.permute.xlu0 %598
        %600 = vrot.lane.b32.xlu0 %v594, 94
        %v601 = vpop.permute.xlu0 %600
        %vm602 = vcmask 769024
        %v603 = vsel %vm602, %v597, %v599
        %v604 = vsel %vm602, %v599, %v601
        %v606 = vsel %vm360, %v578, 0
        %v609 = vsel %vm364, %v603, 0
        %v612 = vsel %vm364, %v604, 0
        %614 = vmatprep.subr.bf16.mxu0 %v612
        %615 = vmatpush1.bf16.msra.mxu0 %v609
        %616 = vmatprep.subr.bf16.mxu0 0
        %617 = vmatpush1.bf16.msra.mxu0 0
        %618 = vmatprep.subr.bf16.mxu0 0
        %619 = vmatpush1.bf16.msra.mxu0 0
        %620 = vmatprep.subr.bf16.mxu0 0
        %621 = vmatpush1.bf16.msra.mxu0 0
        %622 = vmatprep.subr.bf16.mxu0 0
        %623 = vmatpush1.bf16.msra.mxu0 0
        %624 = vmatprep.subr.bf16.mxu0 0
        %625 = vmatpush1.bf16.msra.mxu0 0
        %626 = vmatprep.subr.bf16.mxu0 0
        %627 = vmatpush1.bf16.msra.mxu0 0
        %628 = vmatprep.subr.bf16.mxu0 0
        %629 = vmatpush1.bf16.msra.mxu0 0
        %630 = vmatprep.subr.bf16.mxu0 0
        %631 = vmatpush1.bf16.msra.mxu0 0
        %632 = vmatprep.subr.bf16.mxu0 0
        %633 = vmatpush1.bf16.msra.mxu0 0
        %634 = vmatprep.subr.bf16.mxu0 0
        %635 = vmatpush1.bf16.msra.mxu0 0
        %636 = vmatprep.subr.bf16.mxu0 0
        %637 = vmatpush1.bf16.msra.mxu0 0
        %638 = vmatprep.subr.bf16.mxu0 0
        %639 = vmatpush1.bf16.msra.mxu0 0
        %640 = vmatprep.subr.bf16.mxu0 0
        %641 = vmatpush1.bf16.msra.mxu0 0
        %642 = vmatprep.subr.bf16.mxu0 0
        %643 = vmatpush1.bf16.msra.mxu0 0
        %644 = vmatprep.subr.bf16.mxu0 0
        %645 = vmatpush1.bf16.msra.mxu0 0
        %646 = vmatprep.mubr.bf16.mxu0 0
        %647 = vmatmul.mubr.bf16.gmra.mrb[0].mxu0 %v606
        %v648 = vpop.f32.mrb[0].mxu0
        %v649 = vadd.f32 0.0, %v648
        %v650 = vpop.f32.mrb[0].mxu0
        %v651 = vadd.f32 0.0, %v650
        %v652 = vpop.f32.mrb[0].mxu0
        %v653 = vpop.f32.mrb[0].mxu0
        %654 = vdwg.mxu0
        %655 = vrot.lane.b32.xlu0 %v587, 126
        %v656 = vpop.permute.xlu0 %655
        %657 = vrot.lane.b32.xlu0 %v595, 126
        %v658 = vpop.permute.xlu0 %657
        %659 = vrot.lane.b32.xlu0 %v594, 126
        %v660 = vpop.permute.xlu0 %659
        %vm661 = vcmask 1031168
        %v662 = vsel %vm661, %v656, %v658
        %v663 = vsel %vm661, %v658, %v660
        %v665 = vsel %vm360, %v574, 0
        %v668 = vsel %vm364, %v662, 0
        %v671 = vsel %vm364, %v663, 0
        %673 = vmatprep.subr.bf16.mxu0 %v671
        %674 = vmatpush1.bf16.msra.mxu0 %v668
        %675 = vmatprep.subr.bf16.mxu0 0
        %676 = vmatpush1.bf16.msra.mxu0 0
        %677 = vmatprep.subr.bf16.mxu0 0
        %678 = vmatpush1.bf16.msra.mxu0 0
        %679 = vmatprep.subr.bf16.mxu0 0
        %680 = vmatpush1.bf16.msra.mxu0 0
        %681 = vmatprep.subr.bf16.mxu0 0
        %682 = vmatpush1.bf16.msra.mxu0 0
        %683 = vmatprep.subr.bf16.mxu0 0
        %684 = vmatpush1.bf16.msra.mxu0 0
        %685 = vmatprep.subr.bf16.mxu0 0
        %686 = vmatpush1.bf16.msra.mxu0 0
        %687 = vmatprep.subr.bf16.mxu0 0
        %688 = vmatpush1.bf16.msra.mxu0 0
        %689 = vmatprep.subr.bf16.mxu0 0
        %690 = vmatpush1.bf16.msra.mxu0 0
        %691 = vmatprep.subr.bf16.mxu0 0
        %692 = vmatpush1.bf16.msra.mxu0 0
        %693 = vmatprep.subr.bf16.mxu0 0
        %694 = vmatpush1.bf16.msra.mxu0 0
        %695 = vmatprep.subr.bf16.mxu0 0
        %696 = vmatpush1.bf16.msra.mxu0 0
        %697 = vmatprep.subr.bf16.mxu0 0
        %698 = vmatpush1.bf16.msra.mxu0 0
        %699 = vmatprep.subr.bf16.mxu0 0
        %700 = vmatpush1.bf16.msra.mxu0 0
        %701 = vmatprep.subr.bf16.mxu0 0
        %702 = vmatpush1.bf16.msra.mxu0 0
        %703 = vmatprep.subr.bf16.mxu0 0
        %704 = vmatpush1.bf16.msra.mxu0 0
        %705 = vmatprep.mubr.bf16.mxu0 0
        %706 = vmatmul.mubr.bf16.gmra.mrb[0].mxu0 %v665
        %v707 = vpop.f32.mrb[0].mxu0
        %v708 = vadd.f32 %v649, %v707
        %v709 = vpop.f32.mrb[0].mxu0
        %v710 = vadd.f32 %v651, %v709
        %v711 = vpop.f32.mrb[0].mxu0
        %v712 = vpop.f32.mrb[0].mxu0
        %713 = vdwg.mxu0
        %v714 = vld [vmem:[%s254] sm:$0x3f]
        %s715 = sadd.s32 %s325, 7
        %s716 = smul.addr %s715, 4
        %s717 = scalar_lea.vmem %s1, %s716
        %v718 = vld [vmem:[%s717] sm:$0xf]
        %v720 = vcombine.high %v714, %v714
        %v722 = vunpack.c.l.s4 1983009808
        %v723 = vunpack.c.0.s8 %v722
        %v724 = vlaneseq
        %v725 = vshrl.u32 %v724, 7
        %v726 = vsub.s32 %v723, %v725
        %v727 = vrot.slane %v714, %v726
        %v729 = vunpack.c.l.s4 1983009808
        %v730 = vunpack.c.0.s8 %v729
        %v731 = vlaneseq
        %v732 = vshrl.u32 %v731, 7
        %v733 = vsub.s32 %v730, %v732
        %v734 = vrot.slane %v720, %v733
        %v735 = vcombine.high %v727, %v727
        %736 = vrot.lane.b32.xlu0 %v727, 62
        %v737 = vpop.permute.xlu0 %736
        %738 = vrot.lane.b32.xlu0 %v735, 62
        %v739 = vpop.permute.xlu0 %738
        %740 = vrot.lane.b32.xlu0 %v734, 62
        %v741 = vpop.permute.xlu0 %740
        %vm742 = vcmask 506880
        %v743 = vsel %vm742, %v737, %v739
        %v744 = vsel %vm742, %v739, %v741
        %v746 = vsel %vm360, %v718, 0
        %v749 = vsel %vm364, %v743, 0
        %v752 = vsel %vm364, %v744, 0
        %754 = vmatprep.subr.bf16.mxu0 %v752
        %755 = vmatpush1.bf16.msra.mxu0 %v749
        %756 = vmatprep.subr.bf16.mxu0 0
        %757 = vmatpush1.bf16.msra.mxu0 0
        %758 = vmatprep.subr.bf16.mxu0 0
        %759 = vmatpush1.bf16.msra.mxu0 0
        %760 = vmatprep.subr.bf16.mxu0 0
        %761 = vmatpush1.bf16.msra.mxu0 0
        %762 = vmatprep.subr.bf16.mxu0 0
        %763 = vmatpush1.bf16.msra.mxu0 0
        %764 = vmatprep.subr.bf16.mxu0 0
        %765 = vmatpush1.bf16.msra.mxu0 0
        %766 = vmatprep.subr.bf16.mxu0 0
        %767 = vmatpush1.bf16.msra.mxu0 0
        %768 = vmatprep.subr.bf16.mxu0 0
        %769 = vmatpush1.bf16.msra.mxu0 0
        %770 = vmatprep.subr.bf16.mxu0 0
        %771 = vmatpush1.bf16.msra.mxu0 0
        %772 = vmatprep.subr.bf16.mxu0 0
        %773 = vmatpush1.bf16.msra.mxu0 0
        %774 = vmatprep.subr.bf16.mxu0 0
        %775 = vmatpush1.bf16.msra.mxu0 0
        %776 = vmatprep.subr.bf16.mxu0 0
        %777 = vmatpush1.bf16.msra.mxu0 0
        %778 = vmatprep.subr.bf16.mxu0 0
        %779 = vmatpush1.bf16.msra.mxu0 0
        %780 = vmatprep.subr.bf16.mxu0 0
        %781 = vmatpush1.bf16.msra.mxu0 0
        %782 = vmatprep.subr.bf16.mxu0 0
        %783 = vmatpush1.bf16.msra.mxu0 0
        %784 = vmatprep.subr.bf16.mxu0 0
        %785 = vmatpush1.bf16.msra.mxu0 0
        %786 = vmatprep.mubr.bf16.mxu0 0
        %787 = vmatmul.mubr.bf16.gmra.mrb[0].mxu0 %v746
        %v788 = vpop.f32.mrb[0].mxu0
        %v789 = vadd.f32 0.0, %v788
        %v790 = vpop.f32.mrb[0].mxu0
        %v791 = vadd.f32 0.0, %v790
        %v792 = vpop.f32.mrb[0].mxu0
        %v793 = vpop.f32.mrb[0].mxu0
        %794 = vdwg.mxu0
        %v795 = vadd.f32 %v708, %v789
        %v796 = vadd.f32 %v710, %v791
        %v797 = vadd.f32 %v568, %v795
        %v798 = vadd.f32 %v569, %v796
        %v799 = vld [vmem:[%s254] sm:$0x3f]
        %s800 = sadd.s32 %s325, 2
        %s801 = smul.addr %s800, 4
        %s802 = scalar_lea.vmem %s1, %s801
        %v803 = vld [vmem:[%s802] sm:$0xf]
        %s804 = sadd.s32 %s325, 5
        %s805 = smul.addr %s804, 4
        %s806 = scalar_lea.vmem %s1, %s805
        %v807 = vld [vmem:[%s806] sm:$0xf]
        %v809 = vcombine.high %v799, %v799
        %v811 = vunpack.c.l.s4 1983009808
        %v812 = vunpack.c.0.s8 %v811
        %v813 = vlaneseq
        %v814 = vshrl.u32 %v813, 7
        %v815 = vsub.s32 %v812, %v814
        %v816 = vrot.slane %v799, %v815
        %v818 = vunpack.c.l.s4 1983009808
        %v819 = vunpack.c.0.s8 %v818
        %v820 = vlaneseq
        %v821 = vshrl.u32 %v820, 7
        %v822 = vsub.s32 %v819, %v821
        %v823 = vrot.slane %v809, %v822
        %v824 = vcombine.high %v816, %v816
        %825 = vrot.lane.b32.xlu0 %v816, 92
        %v826 = vpop.permute.xlu0 %825
        %827 = vrot.lane.b32.xlu0 %v824, 92
        %v828 = vpop.permute.xlu0 %827
        %829 = vrot.lane.b32.xlu0 %v823, 92
        %v830 = vpop.permute.xlu0 %829
        %vm831 = vcmask 752640
        %v832 = vsel %vm831, %v826, %v828
        %v833 = vsel %vm831, %v828, %v830
        %v835 = vsel %vm360, %v807, 0
        %v838 = vsel %vm364, %v832, 0
        %v841 = vsel %vm364, %v833, 0
        %843 = vmatprep.subr.bf16.mxu0 %v841
        %844 = vmatpush1.bf16.msra.mxu0 %v838
        %845 = vmatprep.subr.bf16.mxu0 0
        %846 = vmatpush1.bf16.msra.mxu0 0
        %847 = vmatprep.subr.bf16.mxu0 0
        %848 = vmatpush1.bf16.msra.mxu0 0
        %849 = vmatprep.subr.bf16.mxu0 0
        %850 = vmatpush1.bf16.msra.mxu0 0
        %851 = vmatprep.subr.bf16.mxu0 0
        %852 = vmatpush1.bf16.msra.mxu0 0
        %853 = vmatprep.subr.bf16.mxu0 0
        %854 = vmatpush1.bf16.msra.mxu0 0
        %855 = vmatprep.subr.bf16.mxu0 0
        %856 = vmatpush1.bf16.msra.mxu0 0
        %857 = vmatprep.subr.bf16.mxu0 0
        %858 = vmatpush1.bf16.msra.mxu0 0
        %859 = vmatprep.subr.bf16.mxu0 0
        %860 = vmatpush1.bf16.msra.mxu0 0
        %861 = vmatprep.subr.bf16.mxu0 0
        %862 = vmatpush1.bf16.msra.mxu0 0
        %863 = vmatprep.subr.bf16.mxu0 0
        %864 = vmatpush1.bf16.msra.mxu0 0
        %865 = vmatprep.subr.bf16.mxu0 0
        %866 = vmatpush1.bf16.msra.mxu0 0
        %867 = vmatprep.subr.bf16.mxu0 0
        %868 = vmatpush1.bf16.msra.mxu0 0
        %869 = vmatprep.subr.bf16.mxu0 0
        %870 = vmatpush1.bf16.msra.mxu0 0
        %871 = vmatprep.subr.bf16.mxu0 0
        %872 = vmatpush1.bf16.msra.mxu0 0
        %873 = vmatprep.subr.bf16.mxu0 0
        %874 = vmatpush1.bf16.msra.mxu0 0
        %875 = vmatprep.mubr.bf16.mxu0 0
        %876 = vmatmul.mubr.bf16.gmra.mrb[0].mxu0 %v835
        %v877 = vpop.f32.mrb[0].mxu0
        %v878 = vadd.f32 0.0, %v877
        %v879 = vpop.f32.mrb[0].mxu0
        %v880 = vadd.f32 0.0, %v879
        %v881 = vpop.f32.mrb[0].mxu0
        %v882 = vpop.f32.mrb[0].mxu0
        %883 = vdwg.mxu0
        %884 = vrot.lane.b32.xlu0 %v816, 124
        %v885 = vpop.permute.xlu0 %884
        %886 = vrot.lane.b32.xlu0 %v824, 124
        %v887 = vpop.permute.xlu0 %886
        %888 = vrot.lane.b32.xlu0 %v823, 124
        %v889 = vpop.permute.xlu0 %888
        %vm890 = vcmask 1014784
        %v891 = vsel %vm890, %v885, %v887
        %v892 = vsel %vm890, %v887, %v889
        %v894 = vsel %vm360, %v803, 0
        %v897 = vsel %vm364, %v891, 0
        %v900 = vsel %vm364, %v892, 0
        %902 = vmatprep.subr.bf16.mxu0 %v900
        %903 = vmatpush1.bf16.msra.mxu0 %v897
        %904 = vmatprep.subr.bf16.mxu0 0
        %905 = vmatpush1.bf16.msra.mxu0 0
        %906 = vmatprep.subr.bf16.mxu0 0
        %907 = vmatpush1.bf16.msra.mxu0 0
        %908 = vmatprep.subr.bf16.mxu0 0
        %909 = vmatpush1.bf16.msra.mxu0 0
        %910 = vmatprep.subr.bf16.mxu0 0
        %911 = vmatpush1.bf16.msra.mxu0 0
        %912 = vmatprep.subr.bf16.mxu0 0
        %913 = vmatpush1.bf16.msra.mxu0 0
        %914 = vmatprep.subr.bf16.mxu0 0
        %915 = vmatpush1.bf16.msra.mxu0 0
        %916 = vmatprep.subr.bf16.mxu0 0
        %917 = vmatpush1.bf16.msra.mxu0 0
        %918 = vmatprep.subr.bf16.mxu0 0
        %919 = vmatpush1.bf16.msra.mxu0 0
        %920 = vmatprep.subr.bf16.mxu0 0
        %921 = vmatpush1.bf16.msra.mxu0 0
        %922 = vmatprep.subr.bf16.mxu0 0
        %923 = vmatpush1.bf16.msra.mxu0 0
        %924 = vmatprep.subr.bf16.mxu0 0
        %925 = vmatpush1.bf16.msra.mxu0 0
        %926 = vmatprep.subr.bf16.mxu0 0
        %927 = vmatpush1.bf16.msra.mxu0 0
        %928 = vmatprep.subr.bf16.mxu0 0
        %929 = vmatpush1.bf16.msra.mxu0 0
        %930 = vmatprep.subr.bf16.mxu0 0
        %931 = vmatpush1.bf16.msra.mxu0 0
        %932 = vmatprep.subr.bf16.mxu0 0
        %933 = vmatpush1.bf16.msra.mxu0 0
        %934 = vmatprep.mubr.bf16.mxu0 0
        %935 = vmatmul.mubr.bf16.gmra.mrb[0].mxu0 %v894
        %v936 = vpop.f32.mrb[0].mxu0
        %v937 = vadd.f32 %v878, %v936
        %v938 = vpop.f32.mrb[0].mxu0
        %v939 = vadd.f32 %v880, %v938
        %v940 = vpop.f32.mrb[0].mxu0
        %v941 = vpop.f32.mrb[0].mxu0
        %942 = vdwg.mxu0
        %v943 = vld [vmem:[%s254] sm:$0x3f]
        %s944 = sadd.s32 %s325, 8
        %s945 = smul.addr %s944, 4
        %s946 = scalar_lea.vmem %s1, %s945
        %v947 = vld [vmem:[%s946] sm:$0xf]
        %v949 = vcombine.high %v943, %v943
        %v951 = vunpack.c.l.s4 1983009808
        %v952 = vunpack.c.0.s8 %v951
        %v953 = vlaneseq
        %v954 = vshrl.u32 %v953, 7
        %v955 = vsub.s32 %v952, %v954
        %v956 = vrot.slane %v943, %v955
        %v958 = vunpack.c.l.s4 1983009808
        %v959 = vunpack.c.0.s8 %v958
        %v960 = vlaneseq
        %v961 = vshrl.u32 %v960, 7
        %v962 = vsub.s32 %v959, %v961
        %v963 = vrot.slane %v949, %v962
        %v964 = vcombine.high %v956, %v956
        %965 = vrot.lane.b32.xlu0 %v956, 60
        %v966 = vpop.permute.xlu0 %965
        %967 = vrot.lane.b32.xlu0 %v964, 60
        %v968 = vpop.permute.xlu0 %967
        %969 = vrot.lane.b32.xlu0 %v963, 60
        %v970 = vpop.permute.xlu0 %969
        %vm971 = vcmask 490496
        %v972 = vsel %vm971, %v966, %v968
        %v973 = vsel %vm971, %v968, %v970
        %v975 = vsel %vm360, %v947, 0
        %v978 = vsel %vm364, %v972, 0
        %v981 = vsel %vm364, %v973, 0
        %983 = vmatprep.subr.bf16.mxu0 %v981
        %984 = vmatpush1.bf16.msra.mxu0 %v978
        %985 = vmatprep.subr.bf16.mxu0 0
        %986 = vmatpush1.bf16.msra.mxu0 0
        %987 = vmatprep.subr.bf16.mxu0 0
        %988 = vmatpush1.bf16.msra.mxu0 0
        %989 = vmatprep.subr.bf16.mxu0 0
        %990 = vmatpush1.bf16.msra.mxu0 0
        %991 = vmatprep.subr.bf16.mxu0 0
        %992 = vmatpush1.bf16.msra.mxu0 0
        %993 = vmatprep.subr.bf16.mxu0 0
        %994 = vmatpush1.bf16.msra.mxu0 0
        %995 = vmatprep.subr.bf16.mxu0 0
        %996 = vmatpush1.bf16.msra.mxu0 0
        %997 = vmatprep.subr.bf16.mxu0 0
        %998 = vmatpush1.bf16.msra.mxu0 0
        %999 = vmatprep.subr.bf16.mxu0 0
        %1000 = vmatpush1.bf16.msra.mxu0 0
        %1001 = vmatprep.subr.bf16.mxu0 0
        %1002 = vmatpush1.bf16.msra.mxu0 0
        %1003 = vmatprep.subr.bf16.mxu0 0
        %1004 = vmatpush1.bf16.msra.mxu0 0
        %1005 = vmatprep.subr.bf16.mxu0 0
        %1006 = vmatpush1.bf16.msra.mxu0 0
        %1007 = vmatprep.subr.bf16.mxu0 0
        %1008 = vmatpush1.bf16.msra.mxu0 0
        %1009 = vmatprep.subr.bf16.mxu0 0
        %1010 = vmatpush1.bf16.msra.mxu0 0
        %1011 = vmatprep.subr.bf16.mxu0 0
        %1012 = vmatpush1.bf16.msra.mxu0 0
        %1013 = vmatprep.subr.bf16.mxu0 0
        %1014 = vmatpush1.bf16.msra.mxu0 0
        %1015 = vmatprep.mubr.bf16.mxu0 0
        %1016 = vmatmul.mubr.bf16.gmra.mrb[0].mxu0 %v975
        %v1017 = vpop.f32.mrb[0].mxu0
        %v1018 = vadd.f32 0.0, %v1017
        %v1019 = vpop.f32.mrb[0].mxu0
        %v1020 = vadd.f32 0.0, %v1019
        %v1021 = vpop.f32.mrb[0].mxu0
        %v1022 = vpop.f32.mrb[0].mxu0
        %1023 = vdwg.mxu0
        %v1024 = vadd.f32 %v937, %v1018
        %v1025 = vadd.f32 %v939, %v1020
        %s1026 = scalar_lea.vmem %s2, 2
        %v1027 = vld [vmem:[%s1026] ss:$4 sm:$0x3]
        %v1029 = vlaneseq
        %v1030 = vshrl.u32 %v1029, 7
        %v1031 = vsub.s32 0, %v1030
        %v1032 = vrot.slane %v1027, %v1031
        %v1033 = vlaneseq
        %v1034 = vshrl.u32 %v1033, 7
        %v1035 = vsub.s32 1, %v1034
        %v1036 = vrot.slane %v1027, %v1035
        %v1039 = vmul.f32 %v1024, %v1032
        %v1040 = vmul.f32 %v1025, %v1036
        %v1041 = vadd.f32 %v797, %v1039
        %v1042 = vadd.f32 %v798, %v1040
        %1043 = vst [vmem:[#allocation2] sm:$0xff] %v1041
        %1044 = vst [vmem:[#allocation2 + $0x8] sm:$0xff] %v1042
        %p1045 = scmp.eq.s32.totalorder %s30, 2
        // Predicated region
        $region41: #{tpu_custom_call.1} parent=31 // pred_check
          %p1046 = pneg %p1045
        $region42: #{tpu_custom_call.1} parent=31 // pred_check_branch
          %1048 = sbr.rel (%p1046) target = $region44
        $region43: #{tpu_custom_call.1} parent=31 // pred_region
          %v1049 = vpack.c.bf16 %v1041, %v1041
          %v1050 = vpack.c.bf16 %v1042, %v1042
          %v1053 = vunpack.c.l.b16 %v1049
          %v1054 = vunpack.c.l.b16 %v1050
          %v1055 = vpack.c.b16 %v1054, %v1053
          %1057 = vst [vmem:[%s276] sm:$0xff] %v1055
          %v1058 = vadd.f32 %v1041, %v1042
          %1059 = vadd.xlane.f32.xlu0 %v1058
          %v1060 = vpop.xlane.xlu0 %1059
          %v1061 = vmul.f32 %v1060, 0.00390625
          %v1062 = vsub.f32 %v1041, %v1061
          %v1063 = vsub.f32 %v1042, %v1061
          %vm1064 = vcmask 7168
          %1065 = vst.msk [vmem:[%s306] sm:$0xff] %vm1064, %v1060
          %v1066 = vmul.f32 %v1062, %v1062
          %v1067 = vmul.f32 %v1063, %v1063
          %v1068 = vadd.f32 %v1066, %v1067
          %1069 = vadd.xlane.f32.xlu0 %v1068
          %v1070 = vpop.xlane.xlu0 %1069
          %1071 = vst.msk [vmem:[%s314] sm:$0xff] %vm1064, %v1070
        $region44: #{tpu_custom_call.1} parent=31 // pred_fallthru
          _
        %s1072 = sand.u32 %s126, 1
        %s1073 = scalar_lea.sflag [#allocation5], %s1072
        %s1074 = sand.u32 %s126, 1
        %s1075 = smul.addr %s1074, 8
        %s1076 = scalar_lea.vmem [#allocation6], %s1075
        %p1077 = scmp.lt.s32.totalorder %s28, 1
        %s1078 = scalar_select %p1077, %s28, 1
        %p1079 = scmp.lt.s32.totalorder %s29, 7
        %s1080 = scalar_select %p1079, %s29, 7
        %s1081 = smul.addr %s1078, 8
        %s1082 = sadd.s32 %s1080, %s1081
        %s1083 = smul.addr %s1082, 8
        %s1084 = scalar_lea.vmem %s4, %s1083
        %p1085 = scmp.lt.s32.totalorder %s28, 1
        %s1086 = scalar_select %p1085, %s28, 1
        %p1087 = scmp.lt.s32.totalorder %s29, 7
        %s1088 = scalar_select %p1087, %s29, 7
        %s1089 = smul.addr %s1086, 8
        %s1090 = sadd.s32 %s1088, %s1089
        %s1091 = smul.addr %s1090, 8
        %s1092 = scalar_lea.vmem %s5, %s1091
        // Predicated region
        $region45: #{tpu_custom_call.1} parent=31 // pred_check
          %p1093 = pneg %p136
        $region46: #{tpu_custom_call.1} parent=31 // pred_check_branch
          %1095 = sbr.rel (%p1093) target = $region48
        $region47: #{tpu_custom_call.1} parent=31 // pred_region
          %s1097 = ssub.s32 128, 128
          %1098 = vsyncadd %s1073, %s1097
          %s1099 = smul.addr %s29, 2
          %s1100 = smul.addr %s28, 16
          %s1101 = sadd.s32 %s1099, %s1100
          %s1102 = smul.addr %s1101, 64
          %s1103 = scalar_lea.hbm %s3, %s1102
          %s1105 = sshll.u32 %s1076, 4
          %s1106 = int_to_ptr.vmem [resolvable:$true] %s1105
          %1108 = dma.vmem_to_hbm [thread:$0]  %s1106, 128, %s1103, %s1073
        $region48: #{tpu_custom_call.1} parent=31 // pred_fallthru
          _
        // Predicated region
        $region49: #{tpu_custom_call.1} parent=31 // pred_check
          %p1109 = pneg %p164
        $region50: #{tpu_custom_call.1} parent=31 // pred_check_branch
          %1111 = sbr.rel (%p1109) target = $region52
        $region51: #{tpu_custom_call.1} parent=31 // pred_region
          _
        $region52: #{tpu_custom_call.1} parent=31 // pred_fallthru
          _
        // Predicated region
        $region53: #{tpu_custom_call.1} parent=31 // pred_check
          %p1112 = pneg %p192
        $region54: #{tpu_custom_call.1} parent=31 // pred_check_branch
          %1114 = sbr.rel (%p1112) target = $region56
        $region55: #{tpu_custom_call.1} parent=31 // pred_region
          _
        $region56: #{tpu_custom_call.1} parent=31 // pred_fallthru
          _
      $region32: #{tpu_custom_call.1} parent=5 // pred_fallthru
        _
      %p1115 = scmp.le.s32.totalorder 2, %s18
      // Predicated region
      $region57: #{tpu_custom_call.1} parent=5 // pred_check
        %p1116 = pneg %p1115
      $region58: #{tpu_custom_call.1} parent=5 // pred_check_branch
        %1118 = sbr.rel (%p1116) target = $region60
      $region59: #{tpu_custom_call.1} parent=5 // pred_region
        %s1119 = ssub.s32 %s18, 2
        // Predicated region
        $region61: #{tpu_custom_call.1} parent=59 // pred_check
          %p1120 = pneg %p142
        $region62: #{tpu_custom_call.1} parent=59 // pred_check_branch
          %1122 = sbr.rel (%p1120) target = $region64
        $region63: #{tpu_custom_call.1} parent=59 // pred_region
          %s1123 = sand.u32 %s127, 1
          %s1124 = scalar_lea.sflag [#allocation5], %s1123
          %s1125 = sand.u32 %s127, 1
          %s1126 = smul.addr %s1125, 8
          %s1127 = scalar_lea.vmem [#allocation6], %s1126
          %1128 = dma.done %s1124, 128
        $region64: #{tpu_custom_call.1} parent=59 // pred_fallthru
          _
        // Predicated region
        $region65: #{tpu_custom_call.1} parent=59 // pred_check
          %p1129 = pneg %p170
        $region66: #{tpu_custom_call.1} parent=59 // pred_check_branch
          %1131 = sbr.rel (%p1129) target = $region68
        $region67: #{tpu_custom_call.1} parent=59 // pred_region
          %p1132 = scmp.lt.s32.totalorder %s31, 1
          %s1133 = scalar_select %p1132, %s31, 1
          %p1134 = scmp.lt.s32.totalorder %s32, 7
          %s1135 = scalar_select %p1134, %s32, 7
          %s1136 = smul.addr %s1133, 8
          %s1137 = sadd.s32 %s1135, %s1136
          %s1138 = smul.addr %s1137, 8
          %s1139 = scalar_lea.vmem %s4, %s1138
        $region68: #{tpu_custom_call.1} parent=59 // pred_fallthru
          _
        // Predicated region
        $region69: #{tpu_custom_call.1} parent=59 // pred_check
          %p1140 = pneg %p198
        $region70: #{tpu_custom_call.1} parent=59 // pred_check_branch
          %1142 = sbr.rel (%p1140) target = $region72
        $region71: #{tpu_custom_call.1} parent=59 // pred_region
          %p1143 = scmp.lt.s32.totalorder %s31, 1
          %s1144 = scalar_select %p1143, %s31, 1
          %p1145 = scmp.lt.s32.totalorder %s32, 7
          %s1146 = scalar_select %p1145, %s32, 7
          %s1147 = smul.addr %s1144, 8
          %s1148 = sadd.s32 %s1146, %s1147
          %s1149 = smul.addr %s1148, 8
          %s1150 = scalar_lea.vmem %s5, %s1149
        $region72: #{tpu_custom_call.1} parent=59 // pred_fallthru
          _
      $region60: #{tpu_custom_call.1} parent=5 // pred_fallthru
        _
    $region6: #{tpu_custom_call.1} parent=1 // loop_footer
      %s22 = sadd.s32 1, %s18
    $region7: #{tpu_custom_call.1} parent=1 // loop_footer_branch
      %17 = sbr.rel target = $region3
    $region8: #{tpu_custom_call.1} parent=1 // loop_exit
      _
    %1151 = vsyncpa [#allocation4], 1
    %s1152 = scalar_lea.sflag [#allocation4], 1
    %1153 = vsyncpa %s1152, 1
    %1154 = vsyncpa [#allocation5], 1
    %s1155 = scalar_lea.sflag [#allocation5], 1
    %1156 = vsyncpa %s1155, 1

</llo_original>
